<compile_context>
chip_gen: v5e
topology: v5e:2x2
jax: 0.10.0
libtpu: 0.0.40
codegen_flags: <defaults>
</compile_context>

<pallas_src>
import jax
import jax.numpy as jnp
from jax import lax
from jax.experimental import pallas as pl
from jax.experimental.pallas import tpu as pltpu

LN_EPS = 1e-5


def _round_up(x, m):
    return ((x + m - 1) // m) * m


def _physical_vmem_bytes():
    try:
        cap = int(pltpu.get_tpu_info().vmem_capacity_bytes)
        if cap > 0:
            return cap
    except Exception:
        pass
    return 64 * 1024 * 1024          # conservative fallback (v7x-sized)


def _vmem_need(tm, c, c2p, itemsize):
    """Conservative per-step working-set estimate in bytes."""
    c_lanes = _round_up(c, 128)       # VMEM tiles are lane-padded to 128
    c4 = 4 * c
    inputs = 2 * 4 * tm * c_lanes * itemsize      # 4 double-buffered x tiles
    outputs = 2 * tm * c2p * itemsize             # double-buffered out tile
    weight = 2 * c4 * c2p * itemsize              # worst case: double-buffered
    scratch = tm * c_lanes * 4 + tm * c2p * 4     # in-kernel f32 temps + acc
    small = 2 * 2 * 2 * c2p * 4                   # wsum + bias rows
    return inputs + outputs + weight + scratch + small


def _choose_tm(n, c, c2p, itemsize, *, tm_max, vmem_budget):
    """Row-tile selection: as large as the VMEM budget allows (amortizes the
    ~0.35us per-grid-step overhead), multiple of 16 (bf16 sublane packing),
    and >=2 grid steps when N is large enough (v7x megacore sharding)."""
    tm = min(tm_max, _round_up(n, 16))
    tm = max(16, tm - tm % 16)
    while tm > 16 and _vmem_need(tm, c, c2p, itemsize) > vmem_budget:
        tm = max(16, (tm // 2) - (tm // 2) % 16)
    if tm >= n:
        if n >= 32:
            tm = max(16, _round_up((n + 1) // 2, 16))   # >= 2 grid steps
        else:
            tm = n                                      # single full block
    return tm


def _patch_merge_kernel(x0_ref, x1_ref, x2_ref, x3_ref,
                        w_ref, wsum_ref, b_ref, o_ref):
    """Fused neighbour-merge + LayerNorm(4C) + Linear(4C -> 2Cp).

    x*_ref : (TM, C)    the four stride-2 neighbour streams (model dtype)
    w_ref  : (4C, 2Cp)  gamma-folded reduction weight (model dtype)
    wsum_ref, b_ref : (1, 2Cp) f32    gamma @ W   and   beta @ W
    o_ref  : (TM, 2Cp)
    """
    c = x0_ref.shape[-1]
    inv_4c = 1.0 / (4.0 * c)
    w = w_ref[...]

    s = sq = acc = None
    for j, x_ref in enumerate((x0_ref, x1_ref, x2_ref, x3_ref)):
        xv = x_ref[...]
        xf = xv.astype(jnp.float32)
        bs = jnp.sum(xf, axis=-1, keepdims=True)
        bq = jnp.sum(xf * xf, axis=-1, keepdims=True)
        d = jnp.dot(xv, w[j * c:(j + 1) * c, :],
                    preferred_element_type=jnp.float32)
        s, sq, acc = (bs, bq, d) if j == 0 else (s + bs, sq + bq, acc + d)

    mean = s * inv_4c
    var = sq * inv_4c - mean * mean              # one-pass variance
    inv = lax.rsqrt(var + LN_EPS)
    out = acc * inv - (mean * inv) * wsum_ref[...] + b_ref[...]
    o_ref[...] = out.astype(o_ref.dtype)


def _merge_norm_reduce(xs, w_fold, wsum, bias, out_dtype, *, tm_max=2048):
    """xs: 4 x (N, C) neighbour streams -> (N, 2Cp) merged+normed+reduced."""
    n, c = xs[0].shape
    c4, c2p = w_fold.shape
    itemsize = jnp.dtype(xs[0].dtype).itemsize

    physical = _physical_vmem_bytes()
    tm = _choose_tm(n, c, c2p, itemsize, tm_max=tm_max,
                    vmem_budget=int(physical * 0.7))
    vmem_limit = int(max(32 * 1024 * 1024,
                         min(int(physical * 0.9),
                             _vmem_need(tm, c, c2p, itemsize)
                             + 16 * 1024 * 1024)))
    grid = (pl.cdiv(n, tm),)

    def build(single_buffer_weight):
        if single_buffer_weight:
            # Grid-invariant weight: one VMEM copy is enough.
            w_spec = pl.BlockSpec((c4, c2p), lambda i: (0, 0),
                                  pipeline_mode=pl.Buffered(1))
        else:
            w_spec = pl.BlockSpec((c4, c2p), lambda i: (0, 0))
        in_specs = ([pl.BlockSpec((tm, c), lambda i: (i, 0)) for _ in range(4)]
                    + [w_spec,
                       pl.BlockSpec((1, c2p), lambda i: (0, 0)),
                       pl.BlockSpec((1, c2p), lambda i: (0, 0))])
        return pl.pallas_call(
            _patch_merge_kernel,
            out_shape=jax.ShapeDtypeStruct((n, c2p), out_dtype),
            grid_spec=pltpu.PrefetchScalarGridSpec(
                num_scalar_prefetch=0,
                grid=grid,
                in_specs=in_specs,
                out_specs=pl.BlockSpec((tm, c2p), lambda i: (i, 0))),
            compiler_params=pltpu.CompilerParams(
                dimension_semantics=("parallel",),
                vmem_limit_bytes=vmem_limit),
        )

    try:
        return build(True)(*xs, w_fold, wsum, bias)
    except Exception:
        # pl.Buffered(1) unsupported on this JAX/libtpu -> default buffering.
        return build(False)(*xs, w_fold, wsum, bias)


def patch_merging_forward(x, params, *, tm_max=2048):
    """Exact semantics of PatchMerging.forward.

    x: (B, D, H, W, C)
    params: {'gamma': (4C,), 'beta': (4C,), 'w': (2C, 4C)}  [torch layout]
    returns: (B, D_out, H_out, W_out, 2C)
    """
    B, D, H, W, C = x.shape

    # pad H / W to even (torch F.pad(x, (0,0, 0,W%2, 0,H%2)))
    if H % 2 == 1 or W % 2 == 1:
        x = jnp.pad(x, ((0, 0), (0, 0), (0, H % 2), (0, W % 2), (0, 0)))
    # pad D to even (only when D > 1)
    if D % 2 == 1 and D != 1:
        x = jnp.pad(x, ((0, 0), (0, D % 2), (0, 0), (0, 0), (0, 0)))

    # Neighbour pattern copied verbatim from the torch module (note: the D>1
    # branch couples the D and H parities exactly as in the source).
    if D == 1:
        x0 = x[:, :, 0::2, 0::2, :]
        x1 = x[:, :, 1::2, 0::2, :]
        x2 = x[:, :, 0::2, 1::2, :]
        x3 = x[:, :, 1::2, 1::2, :]
    else:
        x0 = x[:, 0::2, 0::2, 0::2, :]
        x1 = x[:, 1::2, 1::2, 0::2, :]
        x2 = x[:, 0::2, 0::2, 1::2, :]
        x3 = x[:, 1::2, 1::2, 1::2, :]
    # TODO(synk): gather x0..x3 straight from the (B,D,H,W,C) HBM array inside
    # the kernel with strided make_async_copy DMAs to drop these
    # XLA-materialized slice copies (the last ~1x extra pass over the input).
    out_spatial = x0.shape[:-1]
    xs = [xi.reshape(-1, C) for xi in (x0, x1, x2, x3)]

    # Fold LayerNorm affine around the reduction (torch Linear: y = x @ W.T):
    #   LN(x) @ V = rsqrt(var)*[x @ (gamma*V)] - mean*rsqrt(var)*(gamma@V) + beta@V
    dtype = x.dtype
    gamma = params["gamma"].astype(jnp.float32)
    beta = params["beta"].astype(jnp.float32)
    v = params["w"].astype(jnp.float32).T                  # (4C, 2C)
    c2 = v.shape[1]
    c2p = _round_up(c2, 128)                               # lane-dense output
    w_fold = gamma[:, None] * v                            # (4C, 2C) f32
    wsum = (gamma @ v).reshape(1, c2)                      # gamma @ W
    bias = (beta @ v).reshape(1, c2)                       # beta @ W
    if c2p != c2:
        w_fold = jnp.pad(w_fold, ((0, 0), (0, c2p - c2)))
        wsum = jnp.pad(wsum, ((0, 0), (0, c2p - c2)))
        bias = jnp.pad(bias, ((0, 0), (0, c2p - c2)))
    w_fold = w_fold.astype(dtype)
    # TODO(synk): for very large C on v7x (folded weight > ~1/3 of 64 MiB
    # VMEM), add a second grid axis tiling the 2C output dim instead of
    # keeping the whole weight VMEM-resident.

    out = _merge_norm_reduce(xs, w_fold, wsum, bias, dtype, tm_max=tm_max)
    if c2p != c2:
        out = out[:, :c2]
    return out.reshape(*out_spatial, c2)


def _reference_forward(x, params):
    """Pure-JAX reference (mirrors the torch module) for a sanity check."""
    B, D, H, W, C = x.shape
    if H % 2 == 1 or W % 2 == 1:
        x = jnp.pad(x, ((0, 0), (0, 0), (0, H % 2), (0, W % 2), (0, 0)))
    if D % 2 == 1 and D != 1:
        x = jnp.pad(x, ((0, 0), (0, D % 2), (0, 0), (0, 0), (0, 0)))
    if D == 1:
        x0 = x[:, :, 0::2, 0::2, :]
        x1 = x[:, :, 1::2, 0::2, :]
        x2 = x[:, :, 0::2, 1::2, :]
        x3 = x[:, :, 1::2, 1::2, :]
    else:
        x0 = x[:, 0::2, 0::2, 0::2, :]
        x1 = x[:, 1::2, 1::2, 0::2, :]
        x2 = x[:, 0::2, 0::2, 1::2, :]
        x3 = x[:, 1::2, 1::2, 1::2, :]
    xm = jnp.concatenate([x0, x1, x2, x3], axis=-1)
    mean = jnp.mean(xm, axis=-1, keepdims=True)
    var = jnp.mean(jnp.square(xm - mean), axis=-1, keepdims=True)
    xn = (xm - mean) * lax.rsqrt(var + LN_EPS)
    xn = xn * params["gamma"] + params["beta"]
    return jnp.einsum("...i,oi->...o", xn, params["w"],
                      precision=lax.Precision.HIGHEST)


def init_params(dim, key):
    """Deterministic parameter init matching the module's shapes."""
    c4, c2 = 4 * dim, 2 * dim
    k_w, k_g, k_b = jax.random.split(key, 3)
    w = jax.random.normal(k_w, (c2, c4), jnp.float32) * (1.0 / jnp.sqrt(c4))
    # Random affine so the gamma/beta fold is actually exercised.
    gamma = 1.0 + 0.1 * jax.random.normal(k_g, (c4,), jnp.float32)
    beta = 0.1 * jax.random.normal(k_b, (c4,), jnp.float32)
    return {"w": w, "gamma": gamma, "beta": beta}


if __name__ == "__main__":
    key = jax.random.PRNGKey(0)
    k_x, k_p = jax.random.split(key)

    dim = 32                                  # C=32 -> 4C=128, 2C=64
    B, D, H, W = 2, 2, 8, 8
    x = jax.random.normal(k_x, (B, D, H, W, dim), jnp.float32)
    params = init_params(dim, k_p)

    out = patch_merging_forward(x, params)
    out = jax.block_until_ready(out)

    ref = _reference_forward(x, params)
    assert out.shape == ref.shape, (out.shape, ref.shape)
    err = float(jnp.max(jnp.abs(out - ref)))
    assert err < 1e-3, f"max abs err {err}"

    print("KERNEL_OK")
</pallas_src>

<mosaic_0001>
module attributes {stable_mosaic.version = 11 : i64} {
  func.func @_patch_merge_kernel(%arg0: i32, %arg1: memref<16x32xf32, #tpu.memory_space<vmem>>, %arg2: memref<16x32xf32, #tpu.memory_space<vmem>>, %arg3: memref<16x32xf32, #tpu.memory_space<vmem>>, %arg4: memref<16x32xf32, #tpu.memory_space<vmem>>, %arg5: memref<128x128xf32, #tpu.memory_space<vmem>>, %arg6: memref<1x128xf32, #tpu.memory_space<vmem>>, %arg7: memref<1x128xf32, #tpu.memory_space<vmem>>, %arg8: memref<16x128xf32, #tpu.memory_space<vmem>>) attributes {dimension_semantics = [#tpu.dimension_semantics<parallel>], iteration_bounds = array<i64: 2>, scalar_prefetch = 0 : i64, scratch_operands = 0 : i64, tpu.core_type = #tpu.core_type<tc>, window_params = [{transform_indices = @transform_0, window_bounds = array<i64: 16, 32>}, {transform_indices = @transform_1, window_bounds = array<i64: 16, 32>}, {transform_indices = @transform_2, window_bounds = array<i64: 16, 32>}, {transform_indices = @transform_3, window_bounds = array<i64: 16, 32>}, {pipeline_mode = #tpu.pipeline_mode<synchronous>, transform_indices = @transform_4, window_bounds = array<i64: 128, 128>}, {pipeline_mode = #tpu.pipeline_mode<synchronous>, transform_indices = @transform_5, window_bounds = array<i64: 1, 128>}, {pipeline_mode = #tpu.pipeline_mode<synchronous>, transform_indices = @transform_6, window_bounds = array<i64: 1, 128>}, {transform_indices = @transform_7, window_bounds = array<i64: 16, 128>}]} {
    %c0 = arith.constant 0 : index
    %c0_0 = arith.constant 0 : index
    %0 = vector.load %arg5[%c0, %c0_0] : memref<128x128xf32, #tpu.memory_space<vmem>>, vector<128x128xf32>
    %c0_1 = arith.constant 0 : index
    %c0_2 = arith.constant 0 : index
    %1 = vector.load %arg1[%c0_1, %c0_2] : memref<16x32xf32, #tpu.memory_space<vmem>>, vector<16x32xf32>
    %cst = arith.constant dense<0.000000e+00> : vector<16xf32>
    %2 = vector.multi_reduction <add>, %1, %cst [1] : vector<16x32xf32> to vector<16xf32>
    %3 = vector.shape_cast %2 : vector<16xf32> to vector<16x1xf32>
    %4 = arith.mulf %1, %1 : vector<16x32xf32>
    %cst_3 = arith.constant dense<0.000000e+00> : vector<16xf32>
    %5 = vector.multi_reduction <add>, %4, %cst_3 [1] : vector<16x32xf32> to vector<16xf32>
    %6 = vector.shape_cast %5 : vector<16xf32> to vector<16x1xf32>
    %7 = vector.extract_strided_slice %0 {offsets = [0, 0], sizes = [32, 128], strides = [1, 1]} : vector<128x128xf32> to vector<32x128xf32>
    %cst_4 = arith.constant dense<0.000000e+00> : vector<16x128xf32>
    %8 = tpu.matmul %1, %7, %cst_4 {dimension_numbers = #tpu.dot_dimension_numbers<[1], [0], [0], [1], [0, 0, 1, 1], [], []>} : vector<16x32xf32>, vector<32x128xf32>, vector<16x128xf32> -> vector<16x128xf32>
    %c0_5 = arith.constant 0 : index
    %c0_6 = arith.constant 0 : index
    %9 = vector.load %arg2[%c0_5, %c0_6] : memref<16x32xf32, #tpu.memory_space<vmem>>, vector<16x32xf32>
    %cst_7 = arith.constant dense<0.000000e+00> : vector<16xf32>
    %10 = vector.multi_reduction <add>, %9, %cst_7 [1] : vector<16x32xf32> to vector<16xf32>
    %11 = vector.shape_cast %10 : vector<16xf32> to vector<16x1xf32>
    %12 = arith.mulf %9, %9 : vector<16x32xf32>
    %cst_8 = arith.constant dense<0.000000e+00> : vector<16xf32>
    %13 = vector.multi_reduction <add>, %12, %cst_8 [1] : vector<16x32xf32> to vector<16xf32>
    %14 = vector.shape_cast %13 : vector<16xf32> to vector<16x1xf32>
    %15 = vector.extract_strided_slice %0 {offsets = [32, 0], sizes = [32, 128], strides = [1, 1]} : vector<128x128xf32> to vector<32x128xf32>
    %cst_9 = arith.constant dense<0.000000e+00> : vector<16x128xf32>
    %16 = tpu.matmul %9, %15, %cst_9 {dimension_numbers = #tpu.dot_dimension_numbers<[1], [0], [0], [1], [0, 0, 1, 1], [], []>} : vector<16x32xf32>, vector<32x128xf32>, vector<16x128xf32> -> vector<16x128xf32>
    %17 = arith.addf %3, %11 : vector<16x1xf32>
    %18 = arith.addf %6, %14 : vector<16x1xf32>
    %19 = arith.addf %8, %16 : vector<16x128xf32>
    %c0_10 = arith.constant 0 : index
    %c0_11 = arith.constant 0 : index
    %20 = vector.load %arg3[%c0_10, %c0_11] : memref<16x32xf32, #tpu.memory_space<vmem>>, vector<16x32xf32>
    %cst_12 = arith.constant dense<0.000000e+00> : vector<16xf32>
    %21 = vector.multi_reduction <add>, %20, %cst_12 [1] : vector<16x32xf32> to vector<16xf32>
    %22 = vector.shape_cast %21 : vector<16xf32> to vector<16x1xf32>
    %23 = arith.mulf %20, %20 : vector<16x32xf32>
    %cst_13 = arith.constant dense<0.000000e+00> : vector<16xf32>
    %24 = vector.multi_reduction <add>, %23, %cst_13 [1] : vector<16x32xf32> to vector<16xf32>
    %25 = vector.shape_cast %24 : vector<16xf32> to vector<16x1xf32>
    %26 = vector.extract_strided_slice %0 {offsets = [64, 0], sizes = [32, 128], strides = [1, 1]} : vector<128x128xf32> to vector<32x128xf32>
    %cst_14 = arith.constant dense<0.000000e+00> : vector<16x128xf32>
    %27 = tpu.matmul %20, %26, %cst_14 {dimension_numbers = #tpu.dot_dimension_numbers<[1], [0], [0], [1], [0, 0, 1, 1], [], []>} : vector<16x32xf32>, vector<32x128xf32>, vector<16x128xf32> -> vector<16x128xf32>
    %28 = arith.addf %17, %22 : vector<16x1xf32>
    %29 = arith.addf %18, %25 : vector<16x1xf32>
    %30 = arith.addf %19, %27 : vector<16x128xf32>
    %c0_15 = arith.constant 0 : index
    %c0_16 = arith.constant 0 : index
    %31 = vector.load %arg4[%c0_15, %c0_16] : memref<16x32xf32, #tpu.memory_space<vmem>>, vector<16x32xf32>
    %cst_17 = arith.constant dense<0.000000e+00> : vector<16xf32>
    %32 = vector.multi_reduction <add>, %31, %cst_17 [1] : vector<16x32xf32> to vector<16xf32>
    %33 = vector.shape_cast %32 : vector<16xf32> to vector<16x1xf32>
    %34 = arith.mulf %31, %31 : vector<16x32xf32>
    %cst_18 = arith.constant dense<0.000000e+00> : vector<16xf32>
    %35 = vector.multi_reduction <add>, %34, %cst_18 [1] : vector<16x32xf32> to vector<16xf32>
    %36 = vector.shape_cast %35 : vector<16xf32> to vector<16x1xf32>
    %37 = vector.extract_strided_slice %0 {offsets = [96, 0], sizes = [32, 128], strides = [1, 1]} : vector<128x128xf32> to vector<32x128xf32>
    %cst_19 = arith.constant dense<0.000000e+00> : vector<16x128xf32>
    %38 = tpu.matmul %31, %37, %cst_19 {dimension_numbers = #tpu.dot_dimension_numbers<[1], [0], [0], [1], [0, 0, 1, 1], [], []>} : vector<16x32xf32>, vector<32x128xf32>, vector<16x128xf32> -> vector<16x128xf32>
    %39 = arith.addf %28, %33 : vector<16x1xf32>
    %40 = arith.addf %29, %36 : vector<16x1xf32>
    %41 = arith.addf %30, %38 : vector<16x128xf32>
    %cst_20 = arith.constant 7.812500e-03 : f32
    %42 = vector.broadcast %cst_20 : f32 to vector<16x1xf32>
    %43 = arith.mulf %39, %42 : vector<16x1xf32>
    %cst_21 = arith.constant 7.812500e-03 : f32
    %44 = vector.broadcast %cst_21 : f32 to vector<16x1xf32>
    %45 = arith.mulf %40, %44 : vector<16x1xf32>
    %46 = arith.mulf %43, %43 : vector<16x1xf32>
    %47 = arith.subf %45, %46 : vector<16x1xf32>
    %cst_22 = arith.constant 9.99999974E-6 : f32
    %48 = vector.broadcast %cst_22 : f32 to vector<16x1xf32>
    %49 = arith.addf %47, %48 : vector<16x1xf32>
    %50 = math.rsqrt %49 : vector<16x1xf32>
    %51 = vector.broadcast %50 : vector<16x1xf32> to vector<16x128xf32>
    %52 = arith.mulf %41, %51 : vector<16x128xf32>
    %53 = arith.mulf %43, %50 : vector<16x1xf32>
    %c0_23 = arith.constant 0 : index
    %c0_24 = arith.constant 0 : index
    %54 = vector.load %arg6[%c0_23, %c0_24] : memref<1x128xf32, #tpu.memory_space<vmem>>, vector<1x128xf32>
    %55 = vector.broadcast %53 : vector<16x1xf32> to vector<16x128xf32>
    %56 = vector.broadcast %54 : vector<1x128xf32> to vector<16x128xf32>
    %57 = arith.mulf %55, %56 : vector<16x128xf32>
    %58 = arith.subf %52, %57 : vector<16x128xf32>
    %c0_25 = arith.constant 0 : index
    %c0_26 = arith.constant 0 : index
    %59 = vector.load %arg7[%c0_25, %c0_26] : memref<1x128xf32, #tpu.memory_space<vmem>>, vector<1x128xf32>
    %60 = vector.broadcast %59 : vector<1x128xf32> to vector<16x128xf32>
    %61 = arith.addf %58, %60 : vector<16x128xf32>
    %c0_27 = arith.constant 0 : index
    %c0_28 = arith.constant 0 : index
    %62 = vector.load %arg8[%c0_27, %c0_28] : memref<16x128xf32, #tpu.memory_space<vmem>>, vector<16x128xf32>
    tpu.vector_store %arg8[%c0_27, %c0_28], %61 {strides = array<i32>} : memref<16x128xf32, #tpu.memory_space<vmem>>, vector<16x128xf32>,
    return
  }
  func.func @transform_0(%arg0: i32) -> (i32, i32) {
    %c0_i32 = arith.constant 0 : i32
    %c0_i32_0 = arith.constant 0 : i32
    return %arg0, %c0_i32 : i32, i32
  }
  func.func @transform_1(%arg0: i32) -> (i32, i32) {
    %c0_i32 = arith.constant 0 : i32
    %c0_i32_0 = arith.constant 0 : i32
    return %arg0, %c0_i32 : i32, i32
  }
  func.func @transform_2(%arg0: i32) -> (i32, i32) {
    %c0_i32 = arith.constant 0 : i32
    %c0_i32_0 = arith.constant 0 : i32
    return %arg0, %c0_i32 : i32, i32
  }
  func.func @transform_3(%arg0: i32) -> (i32, i32) {
    %c0_i32 = arith.constant 0 : i32
    %c0_i32_0 = arith.constant 0 : i32
    return %arg0, %c0_i32 : i32, i32
  }
  func.func @transform_4(%arg0: i32) -> (i32, i32) {
    %c0_i32 = arith.constant 0 : i32
    %c0_i32_0 = arith.constant 0 : i32
    %c0_i32_1 = arith.constant 0 : i32
    return %c0_i32, %c0_i32_0 : i32, i32
  }
  func.func @transform_5(%arg0: i32) -> (i32, i32) {
    %c0_i32 = arith.constant 0 : i32
    %c0_i32_0 = arith.constant 0 : i32
    %c0_i32_1 = arith.constant 0 : i32
    return %c0_i32, %c0_i32_0 : i32, i32
  }
  func.func @transform_6(%arg0: i32) -> (i32, i32) {
    %c0_i32 = arith.constant 0 : i32
    %c0_i32_0 = arith.constant 0 : i32
    %c0_i32_1 = arith.constant 0 : i32
    return %c0_i32, %c0_i32_0 : i32, i32
  }
  func.func @transform_7(%arg0: i32) -> (i32, i32) {
    %c0_i32 = arith.constant 0 : i32
    %c0_i32_0 = arith.constant 0 : i32
    return %arg0, %c0_i32 : i32, i32
  }
}

module attributes {stable_mosaic.version = 11 : i64} {
  func.func @_patch_merge_kernel(%arg0: i32, %arg1: memref<16x32xf32, #tpu.memory_space<vmem>>, %arg2: memref<16x32xf32, #tpu.memory_space<vmem>>, %arg3: memref<16x32xf32, #tpu.memory_space<vmem>>, %arg4: memref<16x32xf32, #tpu.memory_space<vmem>>, %arg5: memref<128x128xf32, #tpu.memory_space<vmem>>, %arg6: memref<1x128xf32, #tpu.memory_space<vmem>>, %arg7: memref<1x128xf32, #tpu.memory_space<vmem>>, %arg8: memref<16x128xf32, #tpu.memory_space<vmem>>) attributes {dimension_semantics = [#tpu.dimension_semantics<parallel>], iteration_bounds = array<i64: 2>, scalar_prefetch = 0 : i64, scratch_operands = 0 : i64, tpu.core_type = #tpu.core_type<tc>, window_params = [{transform_indices = @transform_0, window_bounds = array<i64: 16, 32>}, {transform_indices = @transform_1, window_bounds = array<i64: 16, 32>}, {transform_indices = @transform_2, window_bounds = array<i64: 16, 32>}, {transform_indices = @transform_3, window_bounds = array<i64: 16, 32>}, {pipeline_mode = #tpu.pipeline_mode<synchronous>, transform_indices = @transform_4, window_bounds = array<i64: 128, 128>}, {pipeline_mode = #tpu.pipeline_mode<synchronous>, transform_indices = @transform_5, window_bounds = array<i64: 1, 128>}, {pipeline_mode = #tpu.pipeline_mode<synchronous>, transform_indices = @transform_6, window_bounds = array<i64: 1, 128>}, {transform_indices = @transform_7, window_bounds = array<i64: 16, 128>}]} {
    %c0 = arith.constant 0 : index
    %c0_0 = arith.constant 0 : index
    %0 = vector.load %arg5[%c0, %c0_0] : memref<128x128xf32, #tpu.memory_space<vmem>>, vector<128x128xf32>
    %c0_1 = arith.constant 0 : index
    %c0_2 = arith.constant 0 : index
    %1 = vector.load %arg1[%c0_1, %c0_2] : memref<16x32xf32, #tpu.memory_space<vmem>>, vector<16x32xf32>
    %cst = arith.constant dense<0.000000e+00> : vector<16xf32>
    %2 = vector.multi_reduction <add>, %1, %cst [1] : vector<16x32xf32> to vector<16xf32>
    %3 = vector.shape_cast %2 : vector<16xf32> to vector<16x1xf32>
    %4 = arith.mulf %1, %1 : vector<16x32xf32>
    %cst_3 = arith.constant dense<0.000000e+00> : vector<16xf32>
    %5 = vector.multi_reduction <add>, %4, %cst_3 [1] : vector<16x32xf32> to vector<16xf32>
    %6 = vector.shape_cast %5 : vector<16xf32> to vector<16x1xf32>
    %7 = vector.extract_strided_slice %0 {offsets = [0, 0], sizes = [32, 128], strides = [1, 1]} : vector<128x128xf32> to vector<32x128xf32>
    %cst_4 = arith.constant dense<0.000000e+00> : vector<16x128xf32>
    %8 = tpu.matmul %1, %7, %cst_4 {dimension_numbers = #tpu.dot_dimension_numbers<[1], [0], [0], [1], [0, 0, 1, 1], [], []>} : vector<16x32xf32>, vector<32x128xf32>, vector<16x128xf32> -> vector<16x128xf32>
    %c0_5 = arith.constant 0 : index
    %c0_6 = arith.constant 0 : index
    %9 = vector.load %arg2[%c0_5, %c0_6] : memref<16x32xf32, #tpu.memory_space<vmem>>, vector<16x32xf32>
    %cst_7 = arith.constant dense<0.000000e+00> : vector<16xf32>
    %10 = vector.multi_reduction <add>, %9, %cst_7 [1] : vector<16x32xf32> to vector<16xf32>
    %11 = vector.shape_cast %10 : vector<16xf32> to vector<16x1xf32>
    %12 = arith.mulf %9, %9 : vector<16x32xf32>
    %cst_8 = arith.constant dense<0.000000e+00> : vector<16xf32>
    %13 = vector.multi_reduction <add>, %12, %cst_8 [1] : vector<16x32xf32> to vector<16xf32>
    %14 = vector.shape_cast %13 : vector<16xf32> to vector<16x1xf32>
    %15 = vector.extract_strided_slice %0 {offsets = [32, 0], sizes = [32, 128], strides = [1, 1]} : vector<128x128xf32> to vector<32x128xf32>
    %cst_9 = arith.constant dense<0.000000e+00> : vector<16x128xf32>
    %16 = tpu.matmul %9, %15, %cst_9 {dimension_numbers = #tpu.dot_dimension_numbers<[1], [0], [0], [1], [0, 0, 1, 1], [], []>} : vector<16x32xf32>, vector<32x128xf32>, vector<16x128xf32> -> vector<16x128xf32>
    %17 = arith.addf %3, %11 : vector<16x1xf32>
    %18 = arith.addf %6, %14 : vector<16x1xf32>
    %19 = arith.addf %8, %16 : vector<16x128xf32>
    %c0_10 = arith.constant 0 : index
    %c0_11 = arith.constant 0 : index
    %20 = vector.load %arg3[%c0_10, %c0_11] : memref<16x32xf32, #tpu.memory_space<vmem>>, vector<16x32xf32>
    %cst_12 = arith.constant dense<0.000000e+00> : vector<16xf32>
    %21 = vector.multi_reduction <add>, %20, %cst_12 [1] : vector<16x32xf32> to vector<16xf32>
    %22 = vector.shape_cast %21 : vector<16xf32> to vector<16x1xf32>
    %23 = arith.mulf %20, %20 : vector<16x32xf32>
    %cst_13 = arith.constant dense<0.000000e+00> : vector<16xf32>
    %24 = vector.multi_reduction <add>, %23, %cst_13 [1] : vector<16x32xf32> to vector<16xf32>
    %25 = vector.shape_cast %24 : vector<16xf32> to vector<16x1xf32>
    %26 = vector.extract_strided_slice %0 {offsets = [64, 0], sizes = [32, 128], strides = [1, 1]} : vector<128x128xf32> to vector<32x128xf32>
    %cst_14 = arith.constant dense<0.000000e+00> : vector<16x128xf32>
    %27 = tpu.matmul %20, %26, %cst_14 {dimension_numbers = #tpu.dot_dimension_numbers<[1], [0], [0], [1], [0, 0, 1, 1], [], []>} : vector<16x32xf32>, vector<32x128xf32>, vector<16x128xf32> -> vector<16x128xf32>
    %28 = arith.addf %17, %22 : vector<16x1xf32>
    %29 = arith.addf %18, %25 : vector<16x1xf32>
    %30 = arith.addf %19, %27 : vector<16x128xf32>
    %c0_15 = arith.constant 0 : index
    %c0_16 = arith.constant 0 : index
    %31 = vector.load %arg4[%c0_15, %c0_16] : memref<16x32xf32, #tpu.memory_space<vmem>>, vector<16x32xf32>
    %cst_17 = arith.constant dense<0.000000e+00> : vector<16xf32>
    %32 = vector.multi_reduction <add>, %31, %cst_17 [1] : vector<16x32xf32> to vector<16xf32>
    %33 = vector.shape_cast %32 : vector<16xf32> to vector<16x1xf32>
    %34 = arith.mulf %31, %31 : vector<16x32xf32>
    %cst_18 = arith.constant dense<0.000000e+00> : vector<16xf32>
    %35 = vector.multi_reduction <add>, %34, %cst_18 [1] : vector<16x32xf32> to vector<16xf32>
    %36 = vector.shape_cast %35 : vector<16xf32> to vector<16x1xf32>
    %37 = vector.extract_strided_slice %0 {offsets = [96, 0], sizes = [32, 128], strides = [1, 1]} : vector<128x128xf32> to vector<32x128xf32>
    %cst_19 = arith.constant dense<0.000000e+00> : vector<16x128xf32>
    %38 = tpu.matmul %31, %37, %cst_19 {dimension_numbers = #tpu.dot_dimension_numbers<[1], [0], [0], [1], [0, 0, 1, 1], [], []>} : vector<16x32xf32>, vector<32x128xf32>, vector<16x128xf32> -> vector<16x128xf32>
    %39 = arith.addf %28, %33 : vector<16x1xf32>
    %40 = arith.addf %29, %36 : vector<16x1xf32>
    %41 = arith.addf %30, %38 : vector<16x128xf32>
    %cst_20 = arith.constant 7.812500e-03 : f32
    %42 = vector.broadcast %cst_20 : f32 to vector<16x1xf32>
    %43 = arith.mulf %39, %42 : vector<16x1xf32>
    %cst_21 = arith.constant 7.812500e-03 : f32
    %44 = vector.broadcast %cst_21 : f32 to vector<16x1xf32>
    %45 = arith.mulf %40, %44 : vector<16x1xf32>
    %46 = arith.mulf %43, %43 : vector<16x1xf32>
    %47 = arith.subf %45, %46 : vector<16x1xf32>
    %cst_22 = arith.constant 9.99999974E-6 : f32
    %48 = vector.broadcast %cst_22 : f32 to vector<16x1xf32>
    %49 = arith.addf %47, %48 : vector<16x1xf32>
    %50 = math.rsqrt %49 : vector<16x1xf32>
    %51 = vector.broadcast %50 : vector<16x1xf32> to vector<16x128xf32>
    %52 = arith.mulf %41, %51 : vector<16x128xf32>
    %53 = arith.mulf %43, %50 : vector<16x1xf32>
    %c0_23 = arith.constant 0 : index
    %c0_24 = arith.constant 0 : index
    %54 = vector.load %arg6[%c0_23, %c0_24] : memref<1x128xf32, #tpu.memory_space<vmem>>, vector<1x128xf32>
    %55 = vector.broadcast %53 : vector<16x1xf32> to vector<16x128xf32>
    %56 = vector.broadcast %54 : vector<1x128xf32> to vector<16x128xf32>
    %57 = arith.mulf %55, %56 : vector<16x128xf32>
    %58 = arith.subf %52, %57 : vector<16x128xf32>
    %c0_25 = arith.constant 0 : index
    %c0_26 = arith.constant 0 : index
    %59 = vector.load %arg7[%c0_25, %c0_26] : memref<1x128xf32, #tpu.memory_space<vmem>>, vector<1x128xf32>
    %60 = vector.broadcast %59 : vector<1x128xf32> to vector<16x128xf32>
    %61 = arith.addf %58, %60 : vector<16x128xf32>
    %c0_27 = arith.constant 0 : index
    %c0_28 = arith.constant 0 : index
    %62 = vector.load %arg8[%c0_27, %c0_28] : memref<16x128xf32, #tpu.memory_space<vmem>>, vector<16x128xf32>
    tpu.vector_store %arg8[%c0_27, %c0_28], %61 {strides = array<i32>} : memref<16x128xf32, #tpu.memory_space<vmem>>, vector<16x128xf32>,
    return
  }
  func.func @transform_0(%arg0: i32) -> (i32, i32) {
    %c0_i32 = arith.constant 0 : i32
    %c0_i32_0 = arith.constant 0 : i32
    return %arg0, %c0_i32 : i32, i32
  }
  func.func @transform_1(%arg0: i32) -> (i32, i32) {
    %c0_i32 = arith.constant 0 : i32
    %c0_i32_0 = arith.constant 0 : i32
    return %arg0, %c0_i32 : i32, i32
  }
  func.func @transform_2(%arg0: i32) -> (i32, i32) {
    %c0_i32 = arith.constant 0 : i32
    %c0_i32_0 = arith.constant 0 : i32
    return %arg0, %c0_i32 : i32, i32
  }
  func.func @transform_3(%arg0: i32) -> (i32, i32) {
    %c0_i32 = arith.constant 0 : i32
    %c0_i32_0 = arith.constant 0 : i32
    return %arg0, %c0_i32 : i32, i32
  }
  func.func @transform_4(%arg0: i32) -> (i32, i32) {
    %c0_i32 = arith.constant 0 : i32
    %c0_i32_0 = arith.constant 0 : i32
    %c0_i32_1 = arith.constant 0 : i32
    return %c0_i32, %c0_i32_0 : i32, i32
  }
  func.func @transform_5(%arg0: i32) -> (i32, i32) {
    %c0_i32 = arith.constant 0 : i32
    %c0_i32_0 = arith.constant 0 : i32
    %c0_i32_1 = arith.constant 0 : i32
    return %c0_i32, %c0_i32_0 : i32, i32
  }
  func.func @transform_6(%arg0: i32) -> (i32, i32) {
    %c0_i32 = arith.constant 0 : i32
    %c0_i32_0 = arith.constant 0 : i32
    %c0_i32_1 = arith.constant 0 : i32
    return %c0_i32, %c0_i32_0 : i32, i32
  }
  func.func @transform_7(%arg0: i32) -> (i32, i32) {
    %c0_i32 = arith.constant 0 : i32
    %c0_i32_0 = arith.constant 0 : i32
    return %arg0, %c0_i32 : i32, i32
  }
}

</mosaic_0001>

<llo_original>
// kernel: tpu_custom_call.1
$region0: #{tpu_custom_call.1}
  #allocation0 [shape = 'u32[]', space=smem, size = 0x4, offset = 0x4, fixed_abs, tag = 'smem constant byte address 0x4 - core index']
  #allocation1 [shape = 'u32[72,128]{1,0:T(1,128)}', space=vmem, size = 0x9000, scoped, tag = 'internal scratch']
  %s0 = inlined_call_operand.hbm [shape: f32[32,32], index: 0, kind: input, shape index: {}]
  %s1 = inlined_call_operand.hbm [shape: f32[32,32], index: 1, kind: input, shape index: {}]
  %s2 = inlined_call_operand.hbm [shape: f32[32,32], index: 2, kind: input, shape index: {}]
  %s3 = inlined_call_operand.hbm [shape: f32[32,32], index: 3, kind: input, shape index: {}]
  %s4 = inlined_call_operand.hbm [shape: f32[128,128], index: 4, kind: input, shape index: {}]
  %s5 = inlined_call_operand.vmem [shape: f32[1,128], index: 5, kind: input, shape index: {}]
  %s6 = inlined_call_operand.vmem [shape: f32[1,128], index: 6, kind: input, shape index: {}]
  %s7 = inlined_call_operand.hbm [shape: f32[32,128], index: 7, kind: output, shape index: {}]
  %s8 = sld [smem:[#allocation0]]
  $region81: #{tpu_custom_call.1} parent=0
    _
  %s10 = ssub.s32 1, %s8
  %s11 = scalar_select 0, %s10, %s8
  $region1: #{tpu_custom_call.1} parent=0
    #allocation2 [shape = 'u8[16384]{0}', space=vmem, size = 0x4000, scoped, tag = 'input window, operand 0']
    #allocation3 [shape = 's32[2]{0}', space=sflag, size = 0x8, scoped, tag = 'scoped memory for tpu_custom_call.1']
    #allocation4 [shape = 's32[2]{0}', space=sflag, size = 0x8, scoped, tag = 'scoped memory for tpu_custom_call.1']
    #allocation5 [shape = 'u8[16384]{0}', space=vmem, size = 0x4000, scoped, tag = 'input window, operand 1']
    #allocation6 [shape = 's32[2]{0}', space=sflag, size = 0x8, scoped, tag = 'scoped memory for tpu_custom_call.1']
    #allocation7 [shape = 'u8[16384]{0}', space=vmem, size = 0x4000, scoped, tag = 'input window, operand 2']
    #allocation8 [shape = 'u8[16384]{0}', space=vmem, size = 0x4000, scoped, tag = 'input window, operand 3']
    #allocation9 [shape = 's32[2]{0}', space=sflag, size = 0x8, scoped, tag = 'scoped memory for tpu_custom_call.1']
    #allocation10 [shape = 'u8[65536]{0}', space=vmem, size = 0x10000, scoped, tag = 'input window, operand 4, single buffered']
    #allocation11 [shape = 'u8[16384]{0}', space=vmem, size = 0x4000, scoped, tag = 'output window, operand 0']
    %12 = vsyncpa [#allocation3], 0
    %s13 = scalar_lea.sflag [#allocation3], 1
    %14 = vsyncpa %s13, 0
    %15 = vsyncpa [#allocation6], 0
    %s16 = scalar_lea.sflag [#allocation6], 1
    %17 = vsyncpa %s16, 0
    %18 = vsyncpa [#allocation9], 0
    %s19 = scalar_lea.sflag [#allocation9], 1
    %20 = vsyncpa %s19, 0
    %21 = vsyncpa [#allocation4], 0
    %s22 = scalar_lea.sflag [#allocation4], 1
    %23 = vsyncpa %s22, 0
    loop: start=0, step=1, limit=4
    $region2: #{tpu_custom_call.1} parent=1 // loop_pre_header
      _
    $region3: #{tpu_custom_call.1} parent=1 // loop_header
      %s25 = sphi 0, %s29
      %p26 = scmp.ge.s32.totalorder %s25, 4
      %s35 = sphi 0, %s37
      %s38 = sphi 0, %s35
      %s39 = sphi 0, %s38
      %s55 = sphi 0, %s39
      %s61 = sphi 0, %s63
      %s64 = sphi 0, %s61
      %s65 = sphi 0, %s64
      %s81 = sphi 0, %s65
      %s87 = sphi 0, %s89
      %s90 = sphi 0, %s87
      %s91 = sphi 0, %s90
      %s107 = sphi 0, %s91
      %s113 = sphi 0, %s115
      %s116 = sphi 0, %s113
      %s117 = sphi 0, %s116
      %s133 = sphi 0, %s117
      %s137 = sphi 0, %s137
      %s139 = sphi 0, %s137
      %s140 = sphi 0, %s139
      %s154 = sphi 0, %s140
      %s158 = sphi 0, %s158
      %s160 = sphi 0, %s158
      %s161 = sphi 0, %s160
      %s175 = sphi 0, %s161
      %s179 = sphi 0, %s179
      %s181 = sphi 0, %s179
      %s182 = sphi 0, %s181
      %s196 = sphi 0, %s182
      %s202 = sphi 0, %s204
      %s205 = sphi 0, %s202
      %s206 = sphi 0, %s205
      %s222 = sphi 0, %s206
    $region4: #{tpu_custom_call.1} parent=1 // loop_header_branch
      %28 = sbr.rel (%p26) target = $region8
    $region5: #{tpu_custom_call.1} parent=1 // loop_body
      %s30 = ssub.s32 %s25, 1
      %s31 = ssub.s32 %s25, 2
      %s32 = sadd.s32 %s25, 1
      %s33 = ssub.s32 %s25, %s32
      %p34 = scmp.eq.s32.totalorder %s33, 0
      %s36 = sadd.s32 %s35, 1
      %s37 = scalar_select %p34, %s35, %s36
      %p40 = pneg %p34
      %p41 = scmp.eq.s32.totalorder %s25, 1
      %p42 = por %p40, %p41
      %p43 = scmp.ne.s32.totalorder %s35, %s38
      %p44 = scmp.eq.s32.totalorder %s25, 0
      %p45 = por %p43, %p44
      %p46 = scmp.ne.s32.totalorder %s35, %s38
      %p47 = scmp.eq.s32.totalorder %s30, 1
      %p48 = por %p46, %p47
      %p49 = scmp.ne.s32.totalorder %s38, %s39
      %p50 = scmp.eq.s32.totalorder %s30, 0
      %p51 = por %p49, %p50
      %p52 = scmp.ne.s32.totalorder %s38, %s39
      %p53 = scmp.eq.s32.totalorder %s31, 1
      %p54 = por %p52, %p53
      %p56 = scmp.ne.s32.totalorder %s39, %s55
      %p57 = scmp.eq.s32.totalorder %s31, 0
      %p58 = por %p56, %p57
      %s59 = ssub.s32 %s25, %s32
      %p60 = scmp.eq.s32.totalorder %s59, 0
      %s62 = sadd.s32 %s61, 1
      %s63 = scalar_select %p60, %s61, %s62
      %p66 = pneg %p60
      %p67 = scmp.eq.s32.totalorder %s25, 1
      %p68 = por %p66, %p67
      %p69 = scmp.ne.s32.totalorder %s61, %s64
      %p70 = scmp.eq.s32.totalorder %s25, 0
      %p71 = por %p69, %p70
      %p72 = scmp.ne.s32.totalorder %s61, %s64
      %p73 = scmp.eq.s32.totalorder %s30, 1
      %p74 = por %p72, %p73
      %p75 = scmp.ne.s32.totalorder %s64, %s65
      %p76 = scmp.eq.s32.totalorder %s30, 0
      %p77 = por %p75, %p76
      %p78 = scmp.ne.s32.totalorder %s64, %s65
      %p79 = scmp.eq.s32.totalorder %s31, 1
      %p80 = por %p78, %p79
      %p82 = scmp.ne.s32.totalorder %s65, %s81
      %p83 = scmp.eq.s32.totalorder %s31, 0
      %p84 = por %p82, %p83
      %s85 = ssub.s32 %s25, %s32
      %p86 = scmp.eq.s32.totalorder %s85, 0
      %s88 = sadd.s32 %s87, 1
      %s89 = scalar_select %p86, %s87, %s88
      %p92 = pneg %p86
      %p93 = scmp.eq.s32.totalorder %s25, 1
      %p94 = por %p92, %p93
      %p95 = scmp.ne.s32.totalorder %s87, %s90
      %p96 = scmp.eq.s32.totalorder %s25, 0
      %p97 = por %p95, %p96
      %p98 = scmp.ne.s32.totalorder %s87, %s90
      %p99 = scmp.eq.s32.totalorder %s30, 1
      %p100 = por %p98, %p99
      %p101 = scmp.ne.s32.totalorder %s90, %s91
      %p102 = scmp.eq.s32.totalorder %s30, 0
      %p103 = por %p101, %p102
      %p104 = scmp.ne.s32.totalorder %s90, %s91
      %p105 = scmp.eq.s32.totalorder %s31, 1
      %p106 = por %p104, %p105
      %p108 = scmp.ne.s32.totalorder %s91, %s107
      %p109 = scmp.eq.s32.totalorder %s31, 0
      %p110 = por %p108, %p109
      %s111 = ssub.s32 %s25, %s32
      %p112 = scmp.eq.s32.totalorder %s111, 0
      %s114 = sadd.s32 %s113, 1
      %s115 = scalar_select %p112, %s113, %s114
      %p118 = pneg %p112
      %p119 = scmp.eq.s32.totalorder %s25, 1
      %p120 = por %p118, %p119
      %p121 = scmp.ne.s32.totalorder %s113, %s116
      %p122 = scmp.eq.s32.totalorder %s25, 0
      %p123 = por %p121, %p122
      %p124 = scmp.ne.s32.totalorder %s113, %s116
      %p125 = scmp.eq.s32.totalorder %s30, 1
      %p126 = por %p124, %p125
      %p127 = scmp.ne.s32.totalorder %s116, %s117
      %p128 = scmp.eq.s32.totalorder %s30, 0
      %p129 = por %p127, %p128
      %p130 = scmp.ne.s32.totalorder %s116, %s117
      %p131 = scmp.eq.s32.totalorder %s31, 1
      %p132 = por %p130, %p131
      %p134 = scmp.ne.s32.totalorder %s117, %s133
      %p135 = scmp.eq.s32.totalorder %s31, 0
      %p136 = por %p134, %p135
      %s138 = sadd.s32 %s137, 1
      %p141 = scmp.eq.s32.totalorder %s25, 1
      %p142 = scmp.ne.s32.totalorder %s137, %s139
      %p143 = scmp.eq.s32.totalorder %s25, 0
      %p144 = por %p142, %p143
      %p145 = scmp.ne.s32.totalorder %s137, %s139
      %p146 = scmp.eq.s32.totalorder %s30, 1
      %p147 = por %p145, %p146
      %p148 = scmp.ne.s32.totalorder %s139, %s140
      %p149 = scmp.eq.s32.totalorder %s30, 0
      %p150 = por %p148, %p149
      %p151 = scmp.ne.s32.totalorder %s139, %s140
      %p152 = scmp.eq.s32.totalorder %s31, 1
      %p153 = por %p151, %p152
      %p155 = scmp.ne.s32.totalorder %s140, %s154
      %p156 = scmp.eq.s32.totalorder %s31, 0
      %p157 = por %p155, %p156
      %s159 = sadd.s32 %s158, 1
      %p162 = scmp.eq.s32.totalorder %s25, 1
      %p163 = scmp.ne.s32.totalorder %s158, %s160
      %p164 = scmp.eq.s32.totalorder %s25, 0
      %p165 = por %p163, %p164
      %p166 = scmp.ne.s32.totalorder %s158, %s160
      %p167 = scmp.eq.s32.totalorder %s30, 1
      %p168 = por %p166, %p167
      %p169 = scmp.ne.s32.totalorder %s160, %s161
      %p170 = scmp.eq.s32.totalorder %s30, 0
      %p171 = por %p169, %p170
      %p172 = scmp.ne.s32.totalorder %s160, %s161
      %p173 = scmp.eq.s32.totalorder %s31, 1
      %p174 = por %p172, %p173
      %p176 = scmp.ne.s32.totalorder %s161, %s175
      %p177 = scmp.eq.s32.totalorder %s31, 0
      %p178 = por %p176, %p177
      %s180 = sadd.s32 %s179, 1
      %p183 = scmp.eq.s32.totalorder %s25, 1
      %p184 = scmp.ne.s32.totalorder %s179, %s181
      %p185 = scmp.eq.s32.totalorder %s25, 0
      %p186 = por %p184, %p185
      %p187 = scmp.ne.s32.totalorder %s179, %s181
      %p188 = scmp.eq.s32.totalorder %s30, 1
      %p189 = por %p187, %p188
      %p190 = scmp.ne.s32.totalorder %s181, %s182
      %p191 = scmp.eq.s32.totalorder %s30, 0
      %p192 = por %p190, %p191
      %p193 = scmp.ne.s32.totalorder %s181, %s182
      %p194 = scmp.eq.s32.totalorder %s31, 1
      %p195 = por %p193, %p194
      %p197 = scmp.ne.s32.totalorder %s182, %s196
      %p198 = scmp.eq.s32.totalorder %s31, 0
      %p199 = por %p197, %p198
      %s200 = ssub.s32 %s25, %s32
      %p201 = scmp.eq.s32.totalorder %s200, 0
      %s203 = sadd.s32 %s202, 1
      %s204 = scalar_select %p201, %s202, %s203
      %p207 = pneg %p201
      %p208 = scmp.eq.s32.totalorder %s25, 1
      %p209 = por %p207, %p208
      %p210 = scmp.ne.s32.totalorder %s202, %s205
      %p211 = scmp.eq.s32.totalorder %s25, 0
      %p212 = por %p210, %p211
      %p213 = scmp.ne.s32.totalorder %s202, %s205
      %p214 = scmp.eq.s32.totalorder %s30, 1
      %p215 = por %p213, %p214
      %p216 = scmp.ne.s32.totalorder %s205, %s206
      %p217 = scmp.eq.s32.totalorder %s30, 0
      %p218 = por %p216, %p217
      %p219 = scmp.ne.s32.totalorder %s205, %s206
      %p220 = scmp.eq.s32.totalorder %s31, 1
      %p221 = por %p219, %p220
      %p223 = scmp.ne.s32.totalorder %s206, %s222
      %p224 = scmp.eq.s32.totalorder %s31, 0
      %p225 = por %p223, %p224
      %p226 = scmp.le.s32.totalorder 1, %s25
      %p227 = scmp.lt.s32.totalorder %s25, 3
      %p228 = pnand %p226, %p227
      %p229 = pneg %p228
      // Predicated region
      $region9: #{tpu_custom_call.1} parent=5 // pred_check
        _
      $region10: #{tpu_custom_call.1} parent=5 // pred_check_branch
        %231 = sbr.rel (%p228) target = $region12
      $region11: #{tpu_custom_call.1} parent=5 // pred_region
        %s232 = ssub.s32 %s25, 1
        // Predicated region
        $region13: #{tpu_custom_call.1} parent=11 // pred_check
          %p233 = pneg %p150
        $region14: #{tpu_custom_call.1} parent=11 // pred_check_branch
          %235 = sbr.rel (%p233) target = $region16
        $region15: #{tpu_custom_call.1} parent=11 // pred_region
          %237 = vsyncadd [#allocation9], 0
          %s238 = sshll.u32 %s4, 4
          %s239 = int_to_ptr.hbm [resolvable:$true] %s238
          %s240 = sshll.u32 [#allocation10], 4
          %s241 = int_to_ptr.vmem [resolvable:$true] %s240
          %246 = dma.hbm_to_vmem [thread:$0]  %s239, 2048, %s241, [#allocation9], 128, 128, 8
        $region16: #{tpu_custom_call.1} parent=11 // pred_fallthru
          _
        // Predicated region
        $region17: #{tpu_custom_call.1} parent=11 // pred_check
          %p247 = pneg %p171
        $region18: #{tpu_custom_call.1} parent=11 // pred_check_branch
          %249 = sbr.rel (%p247) target = $region20
        $region19: #{tpu_custom_call.1} parent=11 // pred_region
          _
        $region20: #{tpu_custom_call.1} parent=11 // pred_fallthru
          _
        // Predicated region
        $region21: #{tpu_custom_call.1} parent=11 // pred_check
          %p250 = pneg %p192
        $region22: #{tpu_custom_call.1} parent=11 // pred_check_branch
          %252 = sbr.rel (%p250) target = $region24
        $region23: #{tpu_custom_call.1} parent=11 // pred_region
          _
        $region24: #{tpu_custom_call.1} parent=11 // pred_fallthru
          _
      $region12: #{tpu_custom_call.1} parent=5 // pred_fallthru
        _
      %p253 = scmp.lt.s32.totalorder %s25, 2
      // Predicated region
      $region25: #{tpu_custom_call.1} parent=5 // pred_check
        %p254 = pneg %p253
      $region26: #{tpu_custom_call.1} parent=5 // pred_check_branch
        %256 = sbr.rel (%p254) target = $region28
      $region27: #{tpu_custom_call.1} parent=5 // pred_region
        // Predicated region
        $region29: #{tpu_custom_call.1} parent=27 // pred_check
          %p257 = pneg %p45
        $region30: #{tpu_custom_call.1} parent=27 // pred_check_branch
          %259 = sbr.rel (%p257) target = $region32
        $region31: #{tpu_custom_call.1} parent=27 // pred_region
          %s260 = sand.u32 %s35, 1
          %s261 = scalar_lea.sflag [#allocation3], %s260
          %s262 = sand.u32 %s35, 1
          %s263 = smul.addr %s262, 16
          %s264 = scalar_lea.vmem [#allocation2], %s263
          %s265 = smul.u32 2, %s25
          %267 = vsyncadd %s261, 0
          %s268 = smul.addr %s265, 8
          %s269 = scalar_lea.hbm %s0, %s268
          %s270 = sshll.u32 %s269, 4
          %s271 = int_to_ptr.hbm [resolvable:$true] %s270
          %s272 = sshll.u32 %s264, 4
          %s273 = int_to_ptr.vmem [resolvable:$true] %s272
          %278 = dma.hbm_to_vmem [thread:$0]  %s271, 256, %s273, %s261, 128, 128, 8
        $region32: #{tpu_custom_call.1} parent=27 // pred_fallthru
          _
        // Predicated region
        $region33: #{tpu_custom_call.1} parent=27 // pred_check
          %p279 = pneg %p71
        $region34: #{tpu_custom_call.1} parent=27 // pred_check_branch
          %281 = sbr.rel (%p279) target = $region36
        $region35: #{tpu_custom_call.1} parent=27 // pred_region
          %s282 = sand.u32 %s25, 1
          %s283 = scalar_lea.sflag [#allocation6], %s282
          %s284 = sand.u32 %s61, 1
          %s285 = smul.addr %s284, 16
          %s286 = scalar_lea.vmem [#allocation5], %s285
          %s287 = smul.u32 2, %s25
          %289 = vsyncadd %s283, 0
          %s290 = smul.addr %s287, 8
          %s291 = scalar_lea.hbm %s1, %s290
          %s292 = sshll.u32 %s291, 4
          %s293 = int_to_ptr.hbm [resolvable:$true] %s292
          %s294 = sshll.u32 %s286, 4
          %s295 = int_to_ptr.vmem [resolvable:$true] %s294
          %300 = dma.hbm_to_vmem [thread:$0]  %s293, 256, %s295, %s283, 128, 128, 8
        $region36: #{tpu_custom_call.1} parent=27 // pred_fallthru
          _
        // Predicated region
        $region37: #{tpu_custom_call.1} parent=27 // pred_check
          %p301 = pneg %p97
        $region38: #{tpu_custom_call.1} parent=27 // pred_check_branch
          %303 = sbr.rel (%p301) target = $region40
        $region39: #{tpu_custom_call.1} parent=27 // pred_region
          %s304 = sand.u32 %s25, 1
          %s305 = scalar_lea.sflag [#allocation6], %s304
          %s306 = sand.u32 %s87, 1
          %s307 = smul.addr %s306, 16
          %s308 = scalar_lea.vmem [#allocation7], %s307
          %s309 = smul.u32 2, %s25
          %311 = vsyncadd %s305, 0
          %s312 = smul.addr %s309, 8
          %s313 = scalar_lea.hbm %s2, %s312
          %s314 = sshll.u32 %s313, 4
          %s315 = int_to_ptr.hbm [resolvable:$true] %s314
          %s316 = sshll.u32 %s308, 4
          %s317 = int_to_ptr.vmem [resolvable:$true] %s316
          %322 = dma.hbm_to_vmem [thread:$0]  %s315, 256, %s317, %s305, 128, 128, 8
        $region40: #{tpu_custom_call.1} parent=27 // pred_fallthru
          _
        // Predicated region
        $region41: #{tpu_custom_call.1} parent=27 // pred_check
          %p323 = pneg %p123
        $region42: #{tpu_custom_call.1} parent=27 // pred_check_branch
          %325 = sbr.rel (%p323) target = $region44
        $region43: #{tpu_custom_call.1} parent=27 // pred_region
          %s326 = sand.u32 %s25, 1
          %s327 = scalar_lea.sflag [#allocation9], %s326
          %s328 = sand.u32 %s113, 1
          %s329 = smul.addr %s328, 16
          %s330 = scalar_lea.vmem [#allocation8], %s329
          %s331 = smul.u32 2, %s25
          %333 = vsyncadd %s327, 0
          %s334 = smul.addr %s331, 8
          %s335 = scalar_lea.hbm %s3, %s334
          %s336 = sshll.u32 %s335, 4
          %s337 = int_to_ptr.hbm [resolvable:$true] %s336
          %s338 = sshll.u32 %s330, 4
          %s339 = int_to_ptr.vmem [resolvable:$true] %s338
          %344 = dma.hbm_to_vmem [thread:$0]  %s337, 256, %s339, %s327, 128, 128, 8
        $region44: #{tpu_custom_call.1} parent=27 // pred_fallthru
          _
      $region28: #{tpu_custom_call.1} parent=5 // pred_fallthru
        _
      %p345 = scmp.le.s32.totalorder 1, %s25
      %p346 = scmp.lt.s32.totalorder %s25, 3
      %p347 = pnand %p345, %p346
      %p348 = pneg %p347
      // Predicated region
      $region45: #{tpu_custom_call.1} parent=5 // pred_check
        _
      $region46: #{tpu_custom_call.1} parent=5 // pred_check_branch
        %350 = sbr.rel (%p347) target = $region48
      $region47: #{tpu_custom_call.1} parent=5 // pred_region
        %s351 = ssub.s32 %s25, 1
        %s352 = sand.u32 %s38, 1
        %s353 = scalar_lea.sflag [#allocation3], %s352
        %s354 = sand.u32 %s38, 1
        %s355 = smul.addr %s354, 16
        %s356 = scalar_lea.vmem [#allocation2], %s355
        // Predicated region
        $region49: #{tpu_custom_call.1} parent=47 // pred_check
          %p357 = pneg %p51
        $region50: #{tpu_custom_call.1} parent=47 // pred_check_branch
          %359 = sbr.rel (%p357) target = $region52
        $region51: #{tpu_custom_call.1} parent=47 // pred_region
          %361 = dma.done %s353, 256
        $region52: #{tpu_custom_call.1} parent=47 // pred_fallthru
          _
        %s362 = sand.u32 %s30, 1
        %s363 = scalar_lea.sflag [#allocation6], %s362
        %s364 = sand.u32 %s64, 1
        %s365 = smul.addr %s364, 16
        %s366 = scalar_lea.vmem [#allocation5], %s365
        // Predicated region
        $region53: #{tpu_custom_call.1} parent=47 // pred_check
          %p367 = pneg %p77
        $region54: #{tpu_custom_call.1} parent=47 // pred_check_branch
          %369 = sbr.rel (%p367) target = $region56
        $region55: #{tpu_custom_call.1} parent=47 // pred_region
          %371 = dma.done %s363, 256
        $region56: #{tpu_custom_call.1} parent=47 // pred_fallthru
          _
        %s372 = sand.u32 %s30, 1
        %s373 = scalar_lea.sflag [#allocation6], %s372
        %s374 = sand.u32 %s90, 1
        %s375 = smul.addr %s374, 16
        %s376 = scalar_lea.vmem [#allocation7], %s375
        // Predicated region
        $region57: #{tpu_custom_call.1} parent=47 // pred_check
          %p377 = pneg %p103
        $region58: #{tpu_custom_call.1} parent=47 // pred_check_branch
          %379 = sbr.rel (%p377) target = $region60
        $region59: #{tpu_custom_call.1} parent=47 // pred_region
          %381 = dma.done %s373, 256
        $region60: #{tpu_custom_call.1} parent=47 // pred_fallthru
          _
        %s382 = sand.u32 %s30, 1
        %s383 = scalar_lea.sflag [#allocation9], %s382
        %s384 = sand.u32 %s116, 1
        %s385 = smul.addr %s384, 16
        %s386 = scalar_lea.vmem [#allocation8], %s385
        // Predicated region
        $region61: #{tpu_custom_call.1} parent=47 // pred_check
          %p387 = pneg %p129
        $region62: #{tpu_custom_call.1} parent=47 // pred_check_branch
          %389 = sbr.rel (%p387) target = $region64
        $region63: #{tpu_custom_call.1} parent=47 // pred_region
          %391 = dma.done %s383, 256
        $region64: #{tpu_custom_call.1} parent=47 // pred_fallthru
          _
        // Predicated region
        $region65: #{tpu_custom_call.1} parent=47 // pred_check
          %p392 = pneg %p150
        $region66: #{tpu_custom_call.1} parent=47 // pred_check_branch
          %394 = sbr.rel (%p392) target = $region68
        $region67: #{tpu_custom_call.1} parent=47 // pred_region
          %396 = dma.done [#allocation9], 2048
        $region68: #{tpu_custom_call.1} parent=47 // pred_fallthru
          _
        %s397 = sand.u32 %s38, 1
        %s398 = scalar_lea.sflag [#allocation3], %s397
        %s399 = sand.u32 %s38, 1
        %s400 = smul.addr %s399, 16
        %s401 = scalar_lea.vmem [#allocation2], %s400
        %p402 = pneg %p51
        %p403 = pneg %p48
        %s404 = sand.u32 %s30, 1
        %s405 = scalar_lea.sflag [#allocation6], %s404
        %s406 = sand.u32 %s64, 1
        %s407 = smul.addr %s406, 16
        %s408 = scalar_lea.vmem [#allocation5], %s407
        %p409 = pneg %p77
        %p410 = pneg %p74
        %s411 = sand.u32 %s30, 1
        %s412 = scalar_lea.sflag [#allocation6], %s411
        %s413 = sand.u32 %s90, 1
        %s414 = smul.addr %s413, 16
        %s415 = scalar_lea.vmem [#allocation7], %s414
        %p416 = pneg %p103
        %p417 = pneg %p100
        %s418 = sand.u32 %s30, 1
        %s419 = scalar_lea.sflag [#allocation9], %s418
        %s420 = sand.u32 %s116, 1
        %s421 = smul.addr %s420, 16
        %s422 = scalar_lea.vmem [#allocation8], %s421
        %p423 = pneg %p129
        %p424 = pneg %p126
        %p425 = pneg %p150
        %p426 = pneg %p147
        %p427 = pneg %p171
        %p428 = pneg %p168
        %p429 = pneg %p192
        %p430 = pneg %p189
        %p431 = pneg %p218
        %p432 = pneg %p215
        %s433 = sand.u32 %s205, 1
        %s434 = scalar_lea.sflag [#allocation4], %s433
        %s435 = sand.u32 %s205, 1
        %s436 = smul.addr %s435, 16
        %s437 = scalar_lea.vmem [#allocation11], %s436
        %s438 = smul.u32 2, %s30
        %s439 = smul.u32 2, %s30
        %s440 = smul.u32 2, %s30
        %s441 = smul.u32 2, %s30
        %s442 = smul.u32 2, %s30
        %v443 = vld [vmem:[#allocation10] sm:$0xff]
        %v444 = vld [vmem:[#allocation10 + $0x8] sm:$0xff]
        %v445 = vld [vmem:[#allocation10 + $0x10] sm:$0xff]
        %v446 = vld [vmem:[#allocation10 + $0x18] sm:$0xff]
        %v447 = vld [vmem:[#allocation10 + $0x20] sm:$0xff]
        %v448 = vld [vmem:[#allocation10 + $0x28] sm:$0xff]
        %v449 = vld [vmem:[#allocation10 + $0x30] sm:$0xff]
        %v450 = vld [vmem:[#allocation10 + $0x38] sm:$0xff]
        %v451 = vld [vmem:[#allocation10 + $0x40] sm:$0xff]
        %v452 = vld [vmem:[#allocation10 + $0x48] sm:$0xff]
        %v453 = vld [vmem:[#allocation10 + $0x50] sm:$0xff]
        %v454 = vld [vmem:[#allocation10 + $0x58] sm:$0xff]
        %v455 = vld [vmem:[#allocation10 + $0x60] sm:$0xff]
        %v456 = vld [vmem:[#allocation10 + $0x68] sm:$0xff]
        %v457 = vld [vmem:[#allocation10 + $0x70] sm:$0xff]
        %v458 = vld [vmem:[#allocation10 + $0x78] sm:$0xff]
        %v459 = vld [vmem:[%s356] sm:$0xff]
        %v460 = vld [vmem:[%s356 + $0x8] sm:$0xff]
        %vm461 = vcmask 261120
        %v462 = vsel %vm461, %v459, 0.0
        %463 = vadd.xlane.f32.xlu0 %v462
        %v464 = vpop.xlane.xlu0 %463
        %v465 = vsel %vm461, %v460, 0.0
        %466 = vadd.xlane.f32.xlu0 %v465
        %v467 = vpop.xlane.xlu0 %466
        %v468 = vmul.f32 %v459, %v459
        %v469 = vmul.f32 %v460, %v460
        %v470 = vsel %vm461, %v468, 0.0
        %471 = vadd.xlane.f32.xlu0 %v470
        %v472 = vpop.xlane.xlu0 %471
        %v473 = vsel %vm461, %v469, 0.0
        %474 = vadd.xlane.f32.xlu0 %v473
        %v475 = vpop.xlane.xlu0 %474
        %v476 = vld [vmem:[%s366] sm:$0xff]
        %v477 = vld [vmem:[%s366 + $0x8] sm:$0xff]
        %v478 = vsel %vm461, %v476, 0.0
        %479 = vadd.xlane.f32.xlu0 %v478
        %v480 = vpop.xlane.xlu0 %479
        %v481 = vsel %vm461, %v477, 0.0
        %482 = vadd.xlane.f32.xlu0 %v481
        %v483 = vpop.xlane.xlu0 %482
        %v484 = vmul.f32 %v476, %v476
        %v485 = vmul.f32 %v477, %v477
        %v486 = vsel %vm461, %v484, 0.0
        %487 = vadd.xlane.f32.xlu0 %v486
        %v488 = vpop.xlane.xlu0 %487
        %v489 = vsel %vm461, %v485, 0.0
        %490 = vadd.xlane.f32.xlu0 %v489
        %v491 = vpop.xlane.xlu0 %490
        %v493 = vsel %vm461, %v476, 0
        %v496 = vsel %vm461, %v477, 0
        %498 = vmatpush.msra.mxu0 0.0
        %499 = vmatpush.msra.mxu0 0.0
        %500 = vmatpush.msra.mxu0 0.0
        %501 = vmatpush.msra.mxu0 0.0
        %502 = vmatpush.msra.mxu0 0.0
        %503 = vmatpush.msra.mxu0 0.0
        %504 = vmatpush.msra.mxu0 0.0
        %505 = vmatpush.msra.mxu0 0.0
        %506 = vmatpush.msra.mxu0 0.0
        %507 = vmatpush.msra.mxu0 0.0
        %508 = vmatpush.msra.mxu0 0.0
        %509 = vmatpush.msra.mxu0 0.0
        %510 = vmatpush.msra.mxu0 %v450
        %511 = vmatpush.msra.mxu0 %v449
        %512 = vmatpush.msra.mxu0 %v448
        %513 = vmatpush.msra.mxu0 %v447
        %514 = vmatmul.f32.gmra.mxu0 %v493
        %v515 = vpop.f32.mrf.mxu0
        %v516 = vadd.f32 0.0, %v515
        %517 = vmatmul.f32.gmra.mxu0 %v496
        %v518 = vpop.f32.mrf.mxu0
        %v519 = vadd.f32 0.0, %v518
        %520 = vdwg.mxu0
        %v521 = vadd.f32 %v464, %v480
        %v522 = vadd.f32 %v467, %v483
        %v523 = vadd.f32 %v472, %v488
        %v524 = vadd.f32 %v475, %v491
        %v526 = vsel %vm461, %v459, 0
        %v529 = vsel %vm461, %v460, 0
        %531 = vmatpush.msra.mxu0 0.0
        %532 = vmatpush.msra.mxu0 0.0
        %533 = vmatpush.msra.mxu0 0.0
        %534 = vmatpush.msra.mxu0 0.0
        %535 = vmatpush.msra.mxu0 0.0
        %536 = vmatpush.msra.mxu0 0.0
        %537 = vmatpush.msra.mxu0 0.0
        %538 = vmatpush.msra.mxu0 0.0
        %539 = vmatpush.msra.mxu0 0.0
        %540 = vmatpush.msra.mxu0 0.0
        %541 = vmatpush.msra.mxu0 0.0
        %542 = vmatpush.msra.mxu0 0.0
        %543 = vmatpush.msra.mxu0 %v446
        %544 = vmatpush.msra.mxu0 %v445
        %545 = vmatpush.msra.mxu0 %v444
        %546 = vmatpush.msra.mxu0 %v443
        %547 = vmatmul.f32.gmra.mxu0 %v526
        %v548 = vpop.f32.mrf.mxu0
        %v549 = vadd.f32 %v516, %v548
        %550 = vmatmul.f32.gmra.mxu0 %v529
        %v551 = vpop.f32.mrf.mxu0
        %v552 = vadd.f32 %v519, %v551
        %553 = vdwg.mxu0
        %v554 = vld [vmem:[%s376] sm:$0xff]
        %v555 = vld [vmem:[%s376 + $0x8] sm:$0xff]
        %v556 = vsel %vm461, %v554, 0.0
        %557 = vadd.xlane.f32.xlu0 %v556
        %v558 = vpop.xlane.xlu0 %557
        %v559 = vsel %vm461, %v555, 0.0
        %560 = vadd.xlane.f32.xlu0 %v559
        %v561 = vpop.xlane.xlu0 %560
        %v562 = vmul.f32 %v554, %v554
        %v563 = vmul.f32 %v555, %v555
        %v564 = vsel %vm461, %v562, 0.0
        %565 = vadd.xlane.f32.xlu0 %v564
        %v566 = vpop.xlane.xlu0 %565
        %v567 = vsel %vm461, %v563, 0.0
        %568 = vadd.xlane.f32.xlu0 %v567
        %v569 = vpop.xlane.xlu0 %568
        %v571 = vsel %vm461, %v554, 0
        %v574 = vsel %vm461, %v555, 0
        %576 = vmatpush.msra.mxu0 0.0
        %577 = vmatpush.msra.mxu0 0.0
        %578 = vmatpush.msra.mxu0 0.0
        %579 = vmatpush.msra.mxu0 0.0
        %580 = vmatpush.msra.mxu0 0.0
        %581 = vmatpush.msra.mxu0 0.0
        %582 = vmatpush.msra.mxu0 0.0
        %583 = vmatpush.msra.mxu0 0.0
        %584 = vmatpush.msra.mxu0 0.0
        %585 = vmatpush.msra.mxu0 0.0
        %586 = vmatpush.msra.mxu0 0.0
        %587 = vmatpush.msra.mxu0 0.0
        %588 = vmatpush.msra.mxu0 %v454
        %589 = vmatpush.msra.mxu0 %v453
        %590 = vmatpush.msra.mxu0 %v452
        %591 = vmatpush.msra.mxu0 %v451
        %592 = vmatmul.f32.gmra.mxu0 %v571
        %v593 = vpop.f32.mrf.mxu0
        %v594 = vadd.f32 0.0, %v593
        %595 = vmatmul.f32.gmra.mxu0 %v574
        %v596 = vpop.f32.mrf.mxu0
        %v597 = vadd.f32 0.0, %v596
        %598 = vdwg.mxu0
        %v599 = vadd.f32 %v521, %v558
        %v600 = vadd.f32 %v522, %v561
        %v601 = vadd.f32 %v523, %v566
        %v602 = vadd.f32 %v524, %v569
        %v603 = vadd.f32 %v549, %v594
        %v604 = vadd.f32 %v552, %v597
        %v605 = vld [vmem:[%s386] sm:$0xff]
        %v606 = vld [vmem:[%s386 + $0x8] sm:$0xff]
        %v607 = vsel %vm461, %v605, 0.0
        %608 = vadd.xlane.f32.xlu0 %v607
        %v609 = vpop.xlane.xlu0 %608
        %v610 = vsel %vm461, %v606, 0.0
        %611 = vadd.xlane.f32.xlu0 %v610
        %v612 = vpop.xlane.xlu0 %611
        %v613 = vmul.f32 %v605, %v605
        %v614 = vmul.f32 %v606, %v606
        %v615 = vsel %vm461, %v613, 0.0
        %616 = vadd.xlane.f32.xlu0 %v615
        %v617 = vpop.xlane.xlu0 %616
        %v618 = vsel %vm461, %v614, 0.0
        %619 = vadd.xlane.f32.xlu0 %v618
        %v620 = vpop.xlane.xlu0 %619
        %v622 = vsel %vm461, %v605, 0
        %v625 = vsel %vm461, %v606, 0
        %627 = vmatpush.msra.mxu0 0.0
        %628 = vmatpush.msra.mxu0 0.0
        %629 = vmatpush.msra.mxu0 0.0
        %630 = vmatpush.msra.mxu0 0.0
        %631 = vmatpush.msra.mxu0 0.0
        %632 = vmatpush.msra.mxu0 0.0
        %633 = vmatpush.msra.mxu0 0.0
        %634 = vmatpush.msra.mxu0 0.0
        %635 = vmatpush.msra.mxu0 0.0
        %636 = vmatpush.msra.mxu0 0.0
        %637 = vmatpush.msra.mxu0 0.0
        %638 = vmatpush.msra.mxu0 0.0
        %639 = vmatpush.msra.mxu0 %v458
        %640 = vmatpush.msra.mxu0 %v457
        %641 = vmatpush.msra.mxu0 %v456
        %642 = vmatpush.msra.mxu0 %v455
        %643 = vmatmul.f32.gmra.mxu0 %v622
        %v644 = vpop.f32.mrf.mxu0
        %v645 = vadd.f32 0.0, %v644
        %646 = vmatmul.f32.gmra.mxu0 %v625
        %v647 = vpop.f32.mrf.mxu0
        %v648 = vadd.f32 0.0, %v647
        %649 = vdwg.mxu0
        %v650 = vadd.f32 %v599, %v609
        %v651 = vadd.f32 %v600, %v612
        %v652 = vadd.f32 %v601, %v617
        %v653 = vadd.f32 %v602, %v620
        %v654 = vadd.f32 %v603, %v645
        %v655 = vadd.f32 %v604, %v648
        %v656 = vmul.f32 %v650, 0.0078125
        %v657 = vmul.f32 %v651, 0.0078125
        %v658 = vmul.f32 %v652, 0.0078125
        %v659 = vmul.f32 %v653, 0.0078125
        %v660 = vmul.f32 %v656, %v656
        %v661 = vmul.f32 %v657, %v657
        %v662 = vsub.f32 %v658, %v660
        %v663 = vsub.f32 %v659, %v661
        %v664 = vadd.f32 %v662, 1e-05
        %v665 = vadd.f32 %v663, 1e-05
        %v666 = vrsqrt.pop %v664
        %v667 = vmul.f32 %v666, %v664
        %v668 = vmul.f32 %v667, %v666
        %v669 = vmul.f32 0.5, %v668
        %v670 = vsub.f32 1.5, %v669
        %v671 = vmul.f32 %v666, %v670
        %vm672 = vweird.f32 %v664
        %vm673 = vweird.f32 %v666
        %vm674 = vmor %vm672, %vm673
        %v675 = vsel %vm674, %v666, %v671
        %v676 = vrsqrt.pop %v665
        %v677 = vmul.f32 %v676, %v665
        %v678 = vmul.f32 %v677, %v676
        %v679 = vmul.f32 0.5, %v678
        %v680 = vsub.f32 1.5, %v679
        %v681 = vmul.f32 %v676, %v680
        %vm682 = vweird.f32 %v665
        %vm683 = vweird.f32 %v676
        %vm684 = vmor %vm682, %vm683
        %v685 = vsel %vm684, %v676, %v681
        %v686 = vmul.f32 %v654, %v675
        %v687 = vmul.f32 %v655, %v685
        %v688 = vmul.f32 %v656, %v675
        %v689 = vmul.f32 %v657, %v685
        %v690 = vld [vmem:[%s5] sm:$0x1]
        %v692 = vperm.slane %v690, 0
        %v694 = vmul.f32 %v688, %v692
        %v695 = vmul.f32 %v689, %v692
        %v696 = vsub.f32 %v686, %v694
        %v697 = vsub.f32 %v687, %v695
        %v698 = vld [vmem:[%s6] sm:$0x1]
        %v700 = vperm.slane %v698, 0
        %v702 = vadd.f32 %v696, %v700
        %v703 = vadd.f32 %v697, %v700
        %704 = vst [vmem:[%s437] sm:$0xff] %v702
        %705 = vst [vmem:[%s437 + $0x8] sm:$0xff] %v703
        %s706 = sand.u32 %s205, 1
        %s707 = scalar_lea.sflag [#allocation4], %s706
        %s708 = sand.u32 %s205, 1
        %s709 = smul.addr %s708, 16
        %s710 = scalar_lea.vmem [#allocation11], %s709
        // Predicated region
        $region69: #{tpu_custom_call.1} parent=47 // pred_check
          %p711 = pneg %p215
        $region70: #{tpu_custom_call.1} parent=47 // pred_check_branch
          %713 = sbr.rel (%p711) target = $region72
        $region71: #{tpu_custom_call.1} parent=47 // pred_region
          %s714 = smul.u32 2, %s30
          %716 = vsyncadd %s707, 0
          %s717 = smul.addr %s714, 8
          %s718 = scalar_lea.hbm %s7, %s717
          %s719 = sshll.u32 %s710, 4
          %s720 = int_to_ptr.vmem [resolvable:$true] %s719
          %s721 = sshll.u32 %s718, 4
          %s722 = int_to_ptr.hbm [resolvable:$true] %s721
          %727 = dma.vmem_to_hbm [thread:$0]  %s720, 256, %s722, %s707, 128, 128, 8
        $region72: #{tpu_custom_call.1} parent=47 // pred_fallthru
          _
      $region48: #{tpu_custom_call.1} parent=5 // pred_fallthru
        _
      %p728 = scmp.le.s32.totalorder 2, %s25
      // Predicated region
      $region73: #{tpu_custom_call.1} parent=5 // pred_check
        %p729 = pneg %p728
      $region74: #{tpu_custom_call.1} parent=5 // pred_check_branch
        %731 = sbr.rel (%p729) target = $region76
      $region75: #{tpu_custom_call.1} parent=5 // pred_region
        %s732 = ssub.s32 %s25, 2
        // Predicated region
        $region77: #{tpu_custom_call.1} parent=75 // pred_check
          %p733 = pneg %p221
        $region78: #{tpu_custom_call.1} parent=75 // pred_check_branch
          %735 = sbr.rel (%p733) target = $region80
        $region79: #{tpu_custom_call.1} parent=75 // pred_region
          %s736 = sand.u32 %s206, 1
          %s737 = scalar_lea.sflag [#allocation4], %s736
          %s738 = sand.u32 %s206, 1
          %s739 = smul.addr %s738, 16
          %s740 = scalar_lea.vmem [#allocation11], %s739
          %742 = dma.done %s737, 256
        $region80: #{tpu_custom_call.1} parent=75 // pred_fallthru
          _
      $region76: #{tpu_custom_call.1} parent=5 // pred_fallthru
        _
    $region6: #{tpu_custom_call.1} parent=1 // loop_footer
      %s29 = sadd.s32 1, %s25
    $region7: #{tpu_custom_call.1} parent=1 // loop_footer_branch
      %24 = sbr.rel target = $region3
    $region8: #{tpu_custom_call.1} parent=1 // loop_exit
      _
    %743 = vsyncpa [#allocation3], 1
    %s744 = scalar_lea.sflag [#allocation3], 1
    %745 = vsyncpa %s744, 1
    %746 = vsyncpa [#allocation6], 1
    %s747 = scalar_lea.sflag [#allocation6], 1
    %748 = vsyncpa %s747, 1
    %749 = vsyncpa [#allocation9], 1
    %s750 = scalar_lea.sflag [#allocation9], 1
    %751 = vsyncpa %s750, 1
    %752 = vsyncpa [#allocation4], 1
    %s753 = scalar_lea.sflag [#allocation4], 1
    %754 = vsyncpa %s753, 1

// kernel: tpu_custom_call.1
$region0: #{tpu_custom_call.1}
  #allocation0 [shape = 'u32[]', space=smem, size = 0x4, offset = 0x4, fixed_abs, tag = 'smem constant byte address 0x4 - core index']
  #allocation1 [shape = 'u32[72,128]{1,0:T(1,128)}', space=vmem, size = 0x9000, scoped, tag = 'internal scratch']
  %s0 = inlined_call_operand.hbm [shape: f32[32,32], index: 0, kind: input, shape index: {}]
  %s1 = inlined_call_operand.hbm [shape: f32[32,32], index: 1, kind: input, shape index: {}]
  %s2 = inlined_call_operand.hbm [shape: f32[32,32], index: 2, kind: input, shape index: {}]
  %s3 = inlined_call_operand.hbm [shape: f32[32,32], index: 3, kind: input, shape index: {}]
  %s4 = inlined_call_operand.hbm [shape: f32[128,128], index: 4, kind: input, shape index: {}]
  %s5 = inlined_call_operand.vmem [shape: f32[1,128], index: 5, kind: input, shape index: {}]
  %s6 = inlined_call_operand.vmem [shape: f32[1,128], index: 6, kind: input, shape index: {}]
  %s7 = inlined_call_operand.hbm [shape: f32[32,128], index: 7, kind: output, shape index: {}]
  %s8 = sld [smem:[#allocation0]]
  $region81: #{tpu_custom_call.1} parent=0
    _
  %s10 = ssub.s32 1, %s8
  %s11 = scalar_select 0, %s10, %s8
  $region1: #{tpu_custom_call.1} parent=0
    #allocation2 [shape = 'u8[16384]{0}', space=vmem, size = 0x4000, scoped, tag = 'input window, operand 0']
    #allocation3 [shape = 's32[2]{0}', space=sflag, size = 0x8, scoped, tag = 'scoped memory for tpu_custom_call.1']
    #allocation4 [shape = 's32[2]{0}', space=sflag, size = 0x8, scoped, tag = 'scoped memory for tpu_custom_call.1']
    #allocation5 [shape = 'u8[16384]{0}', space=vmem, size = 0x4000, scoped, tag = 'input window, operand 1']
    #allocation6 [shape = 's32[2]{0}', space=sflag, size = 0x8, scoped, tag = 'scoped memory for tpu_custom_call.1']
    #allocation7 [shape = 'u8[16384]{0}', space=vmem, size = 0x4000, scoped, tag = 'input window, operand 2']
    #allocation8 [shape = 'u8[16384]{0}', space=vmem, size = 0x4000, scoped, tag = 'input window, operand 3']
    #allocation9 [shape = 's32[2]{0}', space=sflag, size = 0x8, scoped, tag = 'scoped memory for tpu_custom_call.1']
    #allocation10 [shape = 'u8[65536]{0}', space=vmem, size = 0x10000, scoped, tag = 'input window, operand 4, single buffered']
    #allocation11 [shape = 'u8[16384]{0}', space=vmem, size = 0x4000, scoped, tag = 'output window, operand 0']
    %12 = vsyncpa [#allocation3], 0
    %s13 = scalar_lea.sflag [#allocation3], 1
    %14 = vsyncpa %s13, 0
    %15 = vsyncpa [#allocation6], 0
    %s16 = scalar_lea.sflag [#allocation6], 1
    %17 = vsyncpa %s16, 0
    %18 = vsyncpa [#allocation9], 0
    %s19 = scalar_lea.sflag [#allocation9], 1
    %20 = vsyncpa %s19, 0
    %21 = vsyncpa [#allocation4], 0
    %s22 = scalar_lea.sflag [#allocation4], 1
    %23 = vsyncpa %s22, 0
    loop: start=0, step=1, limit=4
    $region2: #{tpu_custom_call.1} parent=1 // loop_pre_header
      _
    $region3: #{tpu_custom_call.1} parent=1 // loop_header
      %s25 = sphi 0, %s29
      %p26 = scmp.ge.s32.totalorder %s25, 4
      %s35 = sphi 0, %s37
      %s38 = sphi 0, %s35
      %s39 = sphi 0, %s38
      %s55 = sphi 0, %s39
      %s61 = sphi 0, %s63
      %s64 = sphi 0, %s61
      %s65 = sphi 0, %s64
      %s81 = sphi 0, %s65
      %s87 = sphi 0, %s89
      %s90 = sphi 0, %s87
      %s91 = sphi 0, %s90
      %s107 = sphi 0, %s91
      %s113 = sphi 0, %s115
      %s116 = sphi 0, %s113
      %s117 = sphi 0, %s116
      %s133 = sphi 0, %s117
      %s137 = sphi 0, %s137
      %s139 = sphi 0, %s137
      %s140 = sphi 0, %s139
      %s154 = sphi 0, %s140
      %s158 = sphi 0, %s158
      %s160 = sphi 0, %s158
      %s161 = sphi 0, %s160
      %s175 = sphi 0, %s161
      %s179 = sphi 0, %s179
      %s181 = sphi 0, %s179
      %s182 = sphi 0, %s181
      %s196 = sphi 0, %s182
      %s202 = sphi 0, %s204
      %s205 = sphi 0, %s202
      %s206 = sphi 0, %s205
      %s222 = sphi 0, %s206
    $region4: #{tpu_custom_call.1} parent=1 // loop_header_branch
      %28 = sbr.rel (%p26) target = $region8
    $region5: #{tpu_custom_call.1} parent=1 // loop_body
      %s30 = ssub.s32 %s25, 1
      %s31 = ssub.s32 %s25, 2
      %s32 = sadd.s32 %s25, 1
      %s33 = ssub.s32 %s25, %s32
      %p34 = scmp.eq.s32.totalorder %s33, 0
      %s36 = sadd.s32 %s35, 1
      %s37 = scalar_select %p34, %s35, %s36
      %p40 = pneg %p34
      %p41 = scmp.eq.s32.totalorder %s25, 1
      %p42 = por %p40, %p41
      %p43 = scmp.ne.s32.totalorder %s35, %s38
      %p44 = scmp.eq.s32.totalorder %s25, 0
      %p45 = por %p43, %p44
      %p46 = scmp.ne.s32.totalorder %s35, %s38
      %p47 = scmp.eq.s32.totalorder %s30, 1
      %p48 = por %p46, %p47
      %p49 = scmp.ne.s32.totalorder %s38, %s39
      %p50 = scmp.eq.s32.totalorder %s30, 0
      %p51 = por %p49, %p50
      %p52 = scmp.ne.s32.totalorder %s38, %s39
      %p53 = scmp.eq.s32.totalorder %s31, 1
      %p54 = por %p52, %p53
      %p56 = scmp.ne.s32.totalorder %s39, %s55
      %p57 = scmp.eq.s32.totalorder %s31, 0
      %p58 = por %p56, %p57
      %s59 = ssub.s32 %s25, %s32
      %p60 = scmp.eq.s32.totalorder %s59, 0
      %s62 = sadd.s32 %s61, 1
      %s63 = scalar_select %p60, %s61, %s62
      %p66 = pneg %p60
      %p67 = scmp.eq.s32.totalorder %s25, 1
      %p68 = por %p66, %p67
      %p69 = scmp.ne.s32.totalorder %s61, %s64
      %p70 = scmp.eq.s32.totalorder %s25, 0
      %p71 = por %p69, %p70
      %p72 = scmp.ne.s32.totalorder %s61, %s64
      %p73 = scmp.eq.s32.totalorder %s30, 1
      %p74 = por %p72, %p73
      %p75 = scmp.ne.s32.totalorder %s64, %s65
      %p76 = scmp.eq.s32.totalorder %s30, 0
      %p77 = por %p75, %p76
      %p78 = scmp.ne.s32.totalorder %s64, %s65
      %p79 = scmp.eq.s32.totalorder %s31, 1
      %p80 = por %p78, %p79
      %p82 = scmp.ne.s32.totalorder %s65, %s81
      %p83 = scmp.eq.s32.totalorder %s31, 0
      %p84 = por %p82, %p83
      %s85 = ssub.s32 %s25, %s32
      %p86 = scmp.eq.s32.totalorder %s85, 0
      %s88 = sadd.s32 %s87, 1
      %s89 = scalar_select %p86, %s87, %s88
      %p92 = pneg %p86
      %p93 = scmp.eq.s32.totalorder %s25, 1
      %p94 = por %p92, %p93
      %p95 = scmp.ne.s32.totalorder %s87, %s90
      %p96 = scmp.eq.s32.totalorder %s25, 0
      %p97 = por %p95, %p96
      %p98 = scmp.ne.s32.totalorder %s87, %s90
      %p99 = scmp.eq.s32.totalorder %s30, 1
      %p100 = por %p98, %p99
      %p101 = scmp.ne.s32.totalorder %s90, %s91
      %p102 = scmp.eq.s32.totalorder %s30, 0
      %p103 = por %p101, %p102
      %p104 = scmp.ne.s32.totalorder %s90, %s91
      %p105 = scmp.eq.s32.totalorder %s31, 1
      %p106 = por %p104, %p105
      %p108 = scmp.ne.s32.totalorder %s91, %s107
      %p109 = scmp.eq.s32.totalorder %s31, 0
      %p110 = por %p108, %p109
      %s111 = ssub.s32 %s25, %s32
      %p112 = scmp.eq.s32.totalorder %s111, 0
      %s114 = sadd.s32 %s113, 1
      %s115 = scalar_select %p112, %s113, %s114
      %p118 = pneg %p112
      %p119 = scmp.eq.s32.totalorder %s25, 1
      %p120 = por %p118, %p119
      %p121 = scmp.ne.s32.totalorder %s113, %s116
      %p122 = scmp.eq.s32.totalorder %s25, 0
      %p123 = por %p121, %p122
      %p124 = scmp.ne.s32.totalorder %s113, %s116
      %p125 = scmp.eq.s32.totalorder %s30, 1
      %p126 = por %p124, %p125
      %p127 = scmp.ne.s32.totalorder %s116, %s117
      %p128 = scmp.eq.s32.totalorder %s30, 0
      %p129 = por %p127, %p128
      %p130 = scmp.ne.s32.totalorder %s116, %s117
      %p131 = scmp.eq.s32.totalorder %s31, 1
      %p132 = por %p130, %p131
      %p134 = scmp.ne.s32.totalorder %s117, %s133
      %p135 = scmp.eq.s32.totalorder %s31, 0
      %p136 = por %p134, %p135
      %s138 = sadd.s32 %s137, 1
      %p141 = scmp.eq.s32.totalorder %s25, 1
      %p142 = scmp.ne.s32.totalorder %s137, %s139
      %p143 = scmp.eq.s32.totalorder %s25, 0
      %p144 = por %p142, %p143
      %p145 = scmp.ne.s32.totalorder %s137, %s139
      %p146 = scmp.eq.s32.totalorder %s30, 1
      %p147 = por %p145, %p146
      %p148 = scmp.ne.s32.totalorder %s139, %s140
      %p149 = scmp.eq.s32.totalorder %s30, 0
      %p150 = por %p148, %p149
      %p151 = scmp.ne.s32.totalorder %s139, %s140
      %p152 = scmp.eq.s32.totalorder %s31, 1
      %p153 = por %p151, %p152
      %p155 = scmp.ne.s32.totalorder %s140, %s154
      %p156 = scmp.eq.s32.totalorder %s31, 0
      %p157 = por %p155, %p156
      %s159 = sadd.s32 %s158, 1
      %p162 = scmp.eq.s32.totalorder %s25, 1
      %p163 = scmp.ne.s32.totalorder %s158, %s160
      %p164 = scmp.eq.s32.totalorder %s25, 0
      %p165 = por %p163, %p164
      %p166 = scmp.ne.s32.totalorder %s158, %s160
      %p167 = scmp.eq.s32.totalorder %s30, 1
      %p168 = por %p166, %p167
      %p169 = scmp.ne.s32.totalorder %s160, %s161
      %p170 = scmp.eq.s32.totalorder %s30, 0
      %p171 = por %p169, %p170
      %p172 = scmp.ne.s32.totalorder %s160, %s161
      %p173 = scmp.eq.s32.totalorder %s31, 1
      %p174 = por %p172, %p173
      %p176 = scmp.ne.s32.totalorder %s161, %s175
      %p177 = scmp.eq.s32.totalorder %s31, 0
      %p178 = por %p176, %p177
      %s180 = sadd.s32 %s179, 1
      %p183 = scmp.eq.s32.totalorder %s25, 1
      %p184 = scmp.ne.s32.totalorder %s179, %s181
      %p185 = scmp.eq.s32.totalorder %s25, 0
      %p186 = por %p184, %p185
      %p187 = scmp.ne.s32.totalorder %s179, %s181
      %p188 = scmp.eq.s32.totalorder %s30, 1
      %p189 = por %p187, %p188
      %p190 = scmp.ne.s32.totalorder %s181, %s182
      %p191 = scmp.eq.s32.totalorder %s30, 0
      %p192 = por %p190, %p191
      %p193 = scmp.ne.s32.totalorder %s181, %s182
      %p194 = scmp.eq.s32.totalorder %s31, 1
      %p195 = por %p193, %p194
      %p197 = scmp.ne.s32.totalorder %s182, %s196
      %p198 = scmp.eq.s32.totalorder %s31, 0
      %p199 = por %p197, %p198
      %s200 = ssub.s32 %s25, %s32
      %p201 = scmp.eq.s32.totalorder %s200, 0
      %s203 = sadd.s32 %s202, 1
      %s204 = scalar_select %p201, %s202, %s203
      %p207 = pneg %p201
      %p208 = scmp.eq.s32.totalorder %s25, 1
      %p209 = por %p207, %p208
      %p210 = scmp.ne.s32.totalorder %s202, %s205
      %p211 = scmp.eq.s32.totalorder %s25, 0
      %p212 = por %p210, %p211
      %p213 = scmp.ne.s32.totalorder %s202, %s205
      %p214 = scmp.eq.s32.totalorder %s30, 1
      %p215 = por %p213, %p214
      %p216 = scmp.ne.s32.totalorder %s205, %s206
      %p217 = scmp.eq.s32.totalorder %s30, 0
      %p218 = por %p216, %p217
      %p219 = scmp.ne.s32.totalorder %s205, %s206
      %p220 = scmp.eq.s32.totalorder %s31, 1
      %p221 = por %p219, %p220
      %p223 = scmp.ne.s32.totalorder %s206, %s222
      %p224 = scmp.eq.s32.totalorder %s31, 0
      %p225 = por %p223, %p224
      %p226 = scmp.le.s32.totalorder 1, %s25
      %p227 = scmp.lt.s32.totalorder %s25, 3
      %p228 = pnand %p226, %p227
      %p229 = pneg %p228
      // Predicated region
      $region9: #{tpu_custom_call.1} parent=5 // pred_check
        _
      $region10: #{tpu_custom_call.1} parent=5 // pred_check_branch
        %231 = sbr.rel (%p228) target = $region12
      $region11: #{tpu_custom_call.1} parent=5 // pred_region
        %s232 = ssub.s32 %s25, 1
        // Predicated region
        $region13: #{tpu_custom_call.1} parent=11 // pred_check
          %p233 = pneg %p150
        $region14: #{tpu_custom_call.1} parent=11 // pred_check_branch
          %235 = sbr.rel (%p233) target = $region16
        $region15: #{tpu_custom_call.1} parent=11 // pred_region
          %237 = vsyncadd [#allocation9], 0
          %s238 = sshll.u32 %s4, 4
          %s239 = int_to_ptr.hbm [resolvable:$true] %s238
          %s240 = sshll.u32 [#allocation10], 4
          %s241 = int_to_ptr.vmem [resolvable:$true] %s240
          %246 = dma.hbm_to_vmem [thread:$0]  %s239, 2048, %s241, [#allocation9], 128, 128, 8
        $region16: #{tpu_custom_call.1} parent=11 // pred_fallthru
          _
        // Predicated region
        $region17: #{tpu_custom_call.1} parent=11 // pred_check
          %p247 = pneg %p171
        $region18: #{tpu_custom_call.1} parent=11 // pred_check_branch
          %249 = sbr.rel (%p247) target = $region20
        $region19: #{tpu_custom_call.1} parent=11 // pred_region
          _
        $region20: #{tpu_custom_call.1} parent=11 // pred_fallthru
          _
        // Predicated region
        $region21: #{tpu_custom_call.1} parent=11 // pred_check
          %p250 = pneg %p192
        $region22: #{tpu_custom_call.1} parent=11 // pred_check_branch
          %252 = sbr.rel (%p250) target = $region24
        $region23: #{tpu_custom_call.1} parent=11 // pred_region
          _
        $region24: #{tpu_custom_call.1} parent=11 // pred_fallthru
          _
      $region12: #{tpu_custom_call.1} parent=5 // pred_fallthru
        _
      %p253 = scmp.lt.s32.totalorder %s25, 2
      // Predicated region
      $region25: #{tpu_custom_call.1} parent=5 // pred_check
        %p254 = pneg %p253
      $region26: #{tpu_custom_call.1} parent=5 // pred_check_branch
        %256 = sbr.rel (%p254) target = $region28
      $region27: #{tpu_custom_call.1} parent=5 // pred_region
        // Predicated region
        $region29: #{tpu_custom_call.1} parent=27 // pred_check
          %p257 = pneg %p45
        $region30: #{tpu_custom_call.1} parent=27 // pred_check_branch
          %259 = sbr.rel (%p257) target = $region32
        $region31: #{tpu_custom_call.1} parent=27 // pred_region
          %s260 = sand.u32 %s35, 1
          %s261 = scalar_lea.sflag [#allocation3], %s260
          %s262 = sand.u32 %s35, 1
          %s263 = smul.addr %s262, 16
          %s264 = scalar_lea.vmem [#allocation2], %s263
          %s265 = smul.u32 2, %s25
          %267 = vsyncadd %s261, 0
          %s268 = smul.addr %s265, 8
          %s269 = scalar_lea.hbm %s0, %s268
          %s270 = sshll.u32 %s269, 4
          %s271 = int_to_ptr.hbm [resolvable:$true] %s270
          %s272 = sshll.u32 %s264, 4
          %s273 = int_to_ptr.vmem [resolvable:$true] %s272
          %278 = dma.hbm_to_vmem [thread:$0]  %s271, 256, %s273, %s261, 128, 128, 8
        $region32: #{tpu_custom_call.1} parent=27 // pred_fallthru
          _
        // Predicated region
        $region33: #{tpu_custom_call.1} parent=27 // pred_check
          %p279 = pneg %p71
        $region34: #{tpu_custom_call.1} parent=27 // pred_check_branch
          %281 = sbr.rel (%p279) target = $region36
        $region35: #{tpu_custom_call.1} parent=27 // pred_region
          %s282 = sand.u32 %s25, 1
          %s283 = scalar_lea.sflag [#allocation6], %s282
          %s284 = sand.u32 %s61, 1
          %s285 = smul.addr %s284, 16
          %s286 = scalar_lea.vmem [#allocation5], %s285
          %s287 = smul.u32 2, %s25
          %289 = vsyncadd %s283, 0
          %s290 = smul.addr %s287, 8
          %s291 = scalar_lea.hbm %s1, %s290
          %s292 = sshll.u32 %s291, 4
          %s293 = int_to_ptr.hbm [resolvable:$true] %s292
          %s294 = sshll.u32 %s286, 4
          %s295 = int_to_ptr.vmem [resolvable:$true] %s294
          %300 = dma.hbm_to_vmem [thread:$0]  %s293, 256, %s295, %s283, 128, 128, 8
        $region36: #{tpu_custom_call.1} parent=27 // pred_fallthru
          _
        // Predicated region
        $region37: #{tpu_custom_call.1} parent=27 // pred_check
          %p301 = pneg %p97
        $region38: #{tpu_custom_call.1} parent=27 // pred_check_branch
          %303 = sbr.rel (%p301) target = $region40
        $region39: #{tpu_custom_call.1} parent=27 // pred_region
          %s304 = sand.u32 %s25, 1
          %s305 = scalar_lea.sflag [#allocation6], %s304
          %s306 = sand.u32 %s87, 1
          %s307 = smul.addr %s306, 16
          %s308 = scalar_lea.vmem [#allocation7], %s307
          %s309 = smul.u32 2, %s25
          %311 = vsyncadd %s305, 0
          %s312 = smul.addr %s309, 8
          %s313 = scalar_lea.hbm %s2, %s312
          %s314 = sshll.u32 %s313, 4
          %s315 = int_to_ptr.hbm [resolvable:$true] %s314
          %s316 = sshll.u32 %s308, 4
          %s317 = int_to_ptr.vmem [resolvable:$true] %s316
          %322 = dma.hbm_to_vmem [thread:$0]  %s315, 256, %s317, %s305, 128, 128, 8
        $region40: #{tpu_custom_call.1} parent=27 // pred_fallthru
          _
        // Predicated region
        $region41: #{tpu_custom_call.1} parent=27 // pred_check
          %p323 = pneg %p123
        $region42: #{tpu_custom_call.1} parent=27 // pred_check_branch
          %325 = sbr.rel (%p323) target = $region44
        $region43: #{tpu_custom_call.1} parent=27 // pred_region
          %s326 = sand.u32 %s25, 1
          %s327 = scalar_lea.sflag [#allocation9], %s326
          %s328 = sand.u32 %s113, 1
          %s329 = smul.addr %s328, 16
          %s330 = scalar_lea.vmem [#allocation8], %s329
          %s331 = smul.u32 2, %s25
          %333 = vsyncadd %s327, 0
          %s334 = smul.addr %s331, 8
          %s335 = scalar_lea.hbm %s3, %s334
          %s336 = sshll.u32 %s335, 4
          %s337 = int_to_ptr.hbm [resolvable:$true] %s336
          %s338 = sshll.u32 %s330, 4
          %s339 = int_to_ptr.vmem [resolvable:$true] %s338
          %344 = dma.hbm_to_vmem [thread:$0]  %s337, 256, %s339, %s327, 128, 128, 8
        $region44: #{tpu_custom_call.1} parent=27 // pred_fallthru
          _
      $region28: #{tpu_custom_call.1} parent=5 // pred_fallthru
        _
      %p345 = scmp.le.s32.totalorder 1, %s25
      %p346 = scmp.lt.s32.totalorder %s25, 3
      %p347 = pnand %p345, %p346
      %p348 = pneg %p347
      // Predicated region
      $region45: #{tpu_custom_call.1} parent=5 // pred_check
        _
      $region46: #{tpu_custom_call.1} parent=5 // pred_check_branch
        %350 = sbr.rel (%p347) target = $region48
      $region47: #{tpu_custom_call.1} parent=5 // pred_region
        %s351 = ssub.s32 %s25, 1
        %s352 = sand.u32 %s38, 1
        %s353 = scalar_lea.sflag [#allocation3], %s352
        %s354 = sand.u32 %s38, 1
        %s355 = smul.addr %s354, 16
        %s356 = scalar_lea.vmem [#allocation2], %s355
        // Predicated region
        $region49: #{tpu_custom_call.1} parent=47 // pred_check
          %p357 = pneg %p51
        $region50: #{tpu_custom_call.1} parent=47 // pred_check_branch
          %359 = sbr.rel (%p357) target = $region52
        $region51: #{tpu_custom_call.1} parent=47 // pred_region
          %361 = dma.done %s353, 256
        $region52: #{tpu_custom_call.1} parent=47 // pred_fallthru
          _
        %s362 = sand.u32 %s30, 1
        %s363 = scalar_lea.sflag [#allocation6], %s362
        %s364 = sand.u32 %s64, 1
        %s365 = smul.addr %s364, 16
        %s366 = scalar_lea.vmem [#allocation5], %s365
        // Predicated region
        $region53: #{tpu_custom_call.1} parent=47 // pred_check
          %p367 = pneg %p77
        $region54: #{tpu_custom_call.1} parent=47 // pred_check_branch
          %369 = sbr.rel (%p367) target = $region56
        $region55: #{tpu_custom_call.1} parent=47 // pred_region
          %371 = dma.done %s363, 256
        $region56: #{tpu_custom_call.1} parent=47 // pred_fallthru
          _
        %s372 = sand.u32 %s30, 1
        %s373 = scalar_lea.sflag [#allocation6], %s372
        %s374 = sand.u32 %s90, 1
        %s375 = smul.addr %s374, 16
        %s376 = scalar_lea.vmem [#allocation7], %s375
        // Predicated region
        $region57: #{tpu_custom_call.1} parent=47 // pred_check
          %p377 = pneg %p103
        $region58: #{tpu_custom_call.1} parent=47 // pred_check_branch
          %379 = sbr.rel (%p377) target = $region60
        $region59: #{tpu_custom_call.1} parent=47 // pred_region
          %381 = dma.done %s373, 256
        $region60: #{tpu_custom_call.1} parent=47 // pred_fallthru
          _
        %s382 = sand.u32 %s30, 1
        %s383 = scalar_lea.sflag [#allocation9], %s382
        %s384 = sand.u32 %s116, 1
        %s385 = smul.addr %s384, 16
        %s386 = scalar_lea.vmem [#allocation8], %s385
        // Predicated region
        $region61: #{tpu_custom_call.1} parent=47 // pred_check
          %p387 = pneg %p129
        $region62: #{tpu_custom_call.1} parent=47 // pred_check_branch
          %389 = sbr.rel (%p387) target = $region64
        $region63: #{tpu_custom_call.1} parent=47 // pred_region
          %391 = dma.done %s383, 256
        $region64: #{tpu_custom_call.1} parent=47 // pred_fallthru
          _
        // Predicated region
        $region65: #{tpu_custom_call.1} parent=47 // pred_check
          %p392 = pneg %p150
        $region66: #{tpu_custom_call.1} parent=47 // pred_check_branch
          %394 = sbr.rel (%p392) target = $region68
        $region67: #{tpu_custom_call.1} parent=47 // pred_region
          %396 = dma.done [#allocation9], 2048
        $region68: #{tpu_custom_call.1} parent=47 // pred_fallthru
          _
        %s397 = sand.u32 %s38, 1
        %s398 = scalar_lea.sflag [#allocation3], %s397
        %s399 = sand.u32 %s38, 1
        %s400 = smul.addr %s399, 16
        %s401 = scalar_lea.vmem [#allocation2], %s400
        %p402 = pneg %p51
        %p403 = pneg %p48
        %s404 = sand.u32 %s30, 1
        %s405 = scalar_lea.sflag [#allocation6], %s404
        %s406 = sand.u32 %s64, 1
        %s407 = smul.addr %s406, 16
        %s408 = scalar_lea.vmem [#allocation5], %s407
        %p409 = pneg %p77
        %p410 = pneg %p74
        %s411 = sand.u32 %s30, 1
        %s412 = scalar_lea.sflag [#allocation6], %s411
        %s413 = sand.u32 %s90, 1
        %s414 = smul.addr %s413, 16
        %s415 = scalar_lea.vmem [#allocation7], %s414
        %p416 = pneg %p103
        %p417 = pneg %p100
        %s418 = sand.u32 %s30, 1
        %s419 = scalar_lea.sflag [#allocation9], %s418
        %s420 = sand.u32 %s116, 1
        %s421 = smul.addr %s420, 16
        %s422 = scalar_lea.vmem [#allocation8], %s421
        %p423 = pneg %p129
        %p424 = pneg %p126
        %p425 = pneg %p150
        %p426 = pneg %p147
        %p427 = pneg %p171
        %p428 = pneg %p168
        %p429 = pneg %p192
        %p430 = pneg %p189
        %p431 = pneg %p218
        %p432 = pneg %p215
        %s433 = sand.u32 %s205, 1
        %s434 = scalar_lea.sflag [#allocation4], %s433
        %s435 = sand.u32 %s205, 1
        %s436 = smul.addr %s435, 16
        %s437 = scalar_lea.vmem [#allocation11], %s436
        %s438 = smul.u32 2, %s30
        %s439 = smul.u32 2, %s30
        %s440 = smul.u32 2, %s30
        %s441 = smul.u32 2, %s30
        %s442 = smul.u32 2, %s30
        %v443 = vld [vmem:[#allocation10] sm:$0xff]
        %v444 = vld [vmem:[#allocation10 + $0x8] sm:$0xff]
        %v445 = vld [vmem:[#allocation10 + $0x10] sm:$0xff]
        %v446 = vld [vmem:[#allocation10 + $0x18] sm:$0xff]
        %v447 = vld [vmem:[#allocation10 + $0x20] sm:$0xff]
        %v448 = vld [vmem:[#allocation10 + $0x28] sm:$0xff]
        %v449 = vld [vmem:[#allocation10 + $0x30] sm:$0xff]
        %v450 = vld [vmem:[#allocation10 + $0x38] sm:$0xff]
        %v451 = vld [vmem:[#allocation10 + $0x40] sm:$0xff]
        %v452 = vld [vmem:[#allocation10 + $0x48] sm:$0xff]
        %v453 = vld [vmem:[#allocation10 + $0x50] sm:$0xff]
        %v454 = vld [vmem:[#allocation10 + $0x58] sm:$0xff]
        %v455 = vld [vmem:[#allocation10 + $0x60] sm:$0xff]
        %v456 = vld [vmem:[#allocation10 + $0x68] sm:$0xff]
        %v457 = vld [vmem:[#allocation10 + $0x70] sm:$0xff]
        %v458 = vld [vmem:[#allocation10 + $0x78] sm:$0xff]
        %v459 = vld [vmem:[%s356] sm:$0xff]
        %v460 = vld [vmem:[%s356 + $0x8] sm:$0xff]
        %vm461 = vcmask 261120
        %v462 = vsel %vm461, %v459, 0.0
        %463 = vadd.xlane.f32.xlu0 %v462
        %v464 = vpop.xlane.xlu0 %463
        %v465 = vsel %vm461, %v460, 0.0
        %466 = vadd.xlane.f32.xlu0 %v465
        %v467 = vpop.xlane.xlu0 %466
        %v468 = vmul.f32 %v459, %v459
        %v469 = vmul.f32 %v460, %v460
        %v470 = vsel %vm461, %v468, 0.0
        %471 = vadd.xlane.f32.xlu0 %v470
        %v472 = vpop.xlane.xlu0 %471
        %v473 = vsel %vm461, %v469, 0.0
        %474 = vadd.xlane.f32.xlu0 %v473
        %v475 = vpop.xlane.xlu0 %474
        %v476 = vld [vmem:[%s366] sm:$0xff]
        %v477 = vld [vmem:[%s366 + $0x8] sm:$0xff]
        %v478 = vsel %vm461, %v476, 0.0
        %479 = vadd.xlane.f32.xlu0 %v478
        %v480 = vpop.xlane.xlu0 %479
        %v481 = vsel %vm461, %v477, 0.0
        %482 = vadd.xlane.f32.xlu0 %v481
        %v483 = vpop.xlane.xlu0 %482
        %v484 = vmul.f32 %v476, %v476
        %v485 = vmul.f32 %v477, %v477
        %v486 = vsel %vm461, %v484, 0.0
        %487 = vadd.xlane.f32.xlu0 %v486
        %v488 = vpop.xlane.xlu0 %487
        %v489 = vsel %vm461, %v485, 0.0
        %490 = vadd.xlane.f32.xlu0 %v489
        %v491 = vpop.xlane.xlu0 %490
        %v493 = vsel %vm461, %v476, 0
        %v496 = vsel %vm461, %v477, 0
        %498 = vmatpush.msra.mxu0 0.0
        %499 = vmatpush.msra.mxu0 0.0
        %500 = vmatpush.msra.mxu0 0.0
        %501 = vmatpush.msra.mxu0 0.0
        %502 = vmatpush.msra.mxu0 0.0
        %503 = vmatpush.msra.mxu0 0.0
        %504 = vmatpush.msra.mxu0 0.0
        %505 = vmatpush.msra.mxu0 0.0
        %506 = vmatpush.msra.mxu0 0.0
        %507 = vmatpush.msra.mxu0 0.0
        %508 = vmatpush.msra.mxu0 0.0
        %509 = vmatpush.msra.mxu0 0.0
        %510 = vmatpush.msra.mxu0 %v450
        %511 = vmatpush.msra.mxu0 %v449
        %512 = vmatpush.msra.mxu0 %v448
        %513 = vmatpush.msra.mxu0 %v447
        %514 = vmatmul.f32.gmra.mxu0 %v493
        %v515 = vpop.f32.mrf.mxu0
        %v516 = vadd.f32 0.0, %v515
        %517 = vmatmul.f32.gmra.mxu0 %v496
        %v518 = vpop.f32.mrf.mxu0
        %v519 = vadd.f32 0.0, %v518
        %520 = vdwg.mxu0
        %v521 = vadd.f32 %v464, %v480
        %v522 = vadd.f32 %v467, %v483
        %v523 = vadd.f32 %v472, %v488
        %v524 = vadd.f32 %v475, %v491
        %v526 = vsel %vm461, %v459, 0
        %v529 = vsel %vm461, %v460, 0
        %531 = vmatpush.msra.mxu0 0.0
        %532 = vmatpush.msra.mxu0 0.0
        %533 = vmatpush.msra.mxu0 0.0
        %534 = vmatpush.msra.mxu0 0.0
        %535 = vmatpush.msra.mxu0 0.0
        %536 = vmatpush.msra.mxu0 0.0
        %537 = vmatpush.msra.mxu0 0.0
        %538 = vmatpush.msra.mxu0 0.0
        %539 = vmatpush.msra.mxu0 0.0
        %540 = vmatpush.msra.mxu0 0.0
        %541 = vmatpush.msra.mxu0 0.0
        %542 = vmatpush.msra.mxu0 0.0
        %543 = vmatpush.msra.mxu0 %v446
        %544 = vmatpush.msra.mxu0 %v445
        %545 = vmatpush.msra.mxu0 %v444
        %546 = vmatpush.msra.mxu0 %v443
        %547 = vmatmul.f32.gmra.mxu0 %v526
        %v548 = vpop.f32.mrf.mxu0
        %v549 = vadd.f32 %v516, %v548
        %550 = vmatmul.f32.gmra.mxu0 %v529
        %v551 = vpop.f32.mrf.mxu0
        %v552 = vadd.f32 %v519, %v551
        %553 = vdwg.mxu0
        %v554 = vld [vmem:[%s376] sm:$0xff]
        %v555 = vld [vmem:[%s376 + $0x8] sm:$0xff]
        %v556 = vsel %vm461, %v554, 0.0
        %557 = vadd.xlane.f32.xlu0 %v556
        %v558 = vpop.xlane.xlu0 %557
        %v559 = vsel %vm461, %v555, 0.0
        %560 = vadd.xlane.f32.xlu0 %v559
        %v561 = vpop.xlane.xlu0 %560
        %v562 = vmul.f32 %v554, %v554
        %v563 = vmul.f32 %v555, %v555
        %v564 = vsel %vm461, %v562, 0.0
        %565 = vadd.xlane.f32.xlu0 %v564
        %v566 = vpop.xlane.xlu0 %565
        %v567 = vsel %vm461, %v563, 0.0
        %568 = vadd.xlane.f32.xlu0 %v567
        %v569 = vpop.xlane.xlu0 %568
        %v571 = vsel %vm461, %v554, 0
        %v574 = vsel %vm461, %v555, 0
        %576 = vmatpush.msra.mxu0 0.0
        %577 = vmatpush.msra.mxu0 0.0
        %578 = vmatpush.msra.mxu0 0.0
        %579 = vmatpush.msra.mxu0 0.0
        %580 = vmatpush.msra.mxu0 0.0
        %581 = vmatpush.msra.mxu0 0.0
        %582 = vmatpush.msra.mxu0 0.0
        %583 = vmatpush.msra.mxu0 0.0
        %584 = vmatpush.msra.mxu0 0.0
        %585 = vmatpush.msra.mxu0 0.0
        %586 = vmatpush.msra.mxu0 0.0
        %587 = vmatpush.msra.mxu0 0.0
        %588 = vmatpush.msra.mxu0 %v454
        %589 = vmatpush.msra.mxu0 %v453
        %590 = vmatpush.msra.mxu0 %v452
        %591 = vmatpush.msra.mxu0 %v451
        %592 = vmatmul.f32.gmra.mxu0 %v571
        %v593 = vpop.f32.mrf.mxu0
        %v594 = vadd.f32 0.0, %v593
        %595 = vmatmul.f32.gmra.mxu0 %v574
        %v596 = vpop.f32.mrf.mxu0
        %v597 = vadd.f32 0.0, %v596
        %598 = vdwg.mxu0
        %v599 = vadd.f32 %v521, %v558
        %v600 = vadd.f32 %v522, %v561
        %v601 = vadd.f32 %v523, %v566
        %v602 = vadd.f32 %v524, %v569
        %v603 = vadd.f32 %v549, %v594
        %v604 = vadd.f32 %v552, %v597
        %v605 = vld [vmem:[%s386] sm:$0xff]
        %v606 = vld [vmem:[%s386 + $0x8] sm:$0xff]
        %v607 = vsel %vm461, %v605, 0.0
        %608 = vadd.xlane.f32.xlu0 %v607
        %v609 = vpop.xlane.xlu0 %608
        %v610 = vsel %vm461, %v606, 0.0
        %611 = vadd.xlane.f32.xlu0 %v610
        %v612 = vpop.xlane.xlu0 %611
        %v613 = vmul.f32 %v605, %v605
        %v614 = vmul.f32 %v606, %v606
        %v615 = vsel %vm461, %v613, 0.0
        %616 = vadd.xlane.f32.xlu0 %v615
        %v617 = vpop.xlane.xlu0 %616
        %v618 = vsel %vm461, %v614, 0.0
        %619 = vadd.xlane.f32.xlu0 %v618
        %v620 = vpop.xlane.xlu0 %619
        %v622 = vsel %vm461, %v605, 0
        %v625 = vsel %vm461, %v606, 0
        %627 = vmatpush.msra.mxu0 0.0
        %628 = vmatpush.msra.mxu0 0.0
        %629 = vmatpush.msra.mxu0 0.0
        %630 = vmatpush.msra.mxu0 0.0
        %631 = vmatpush.msra.mxu0 0.0
        %632 = vmatpush.msra.mxu0 0.0
        %633 = vmatpush.msra.mxu0 0.0
        %634 = vmatpush.msra.mxu0 0.0
        %635 = vmatpush.msra.mxu0 0.0
        %636 = vmatpush.msra.mxu0 0.0
        %637 = vmatpush.msra.mxu0 0.0
        %638 = vmatpush.msra.mxu0 0.0
        %639 = vmatpush.msra.mxu0 %v458
        %640 = vmatpush.msra.mxu0 %v457
        %641 = vmatpush.msra.mxu0 %v456
        %642 = vmatpush.msra.mxu0 %v455
        %643 = vmatmul.f32.gmra.mxu0 %v622
        %v644 = vpop.f32.mrf.mxu0
        %v645 = vadd.f32 0.0, %v644
        %646 = vmatmul.f32.gmra.mxu0 %v625
        %v647 = vpop.f32.mrf.mxu0
        %v648 = vadd.f32 0.0, %v647
        %649 = vdwg.mxu0
        %v650 = vadd.f32 %v599, %v609
        %v651 = vadd.f32 %v600, %v612
        %v652 = vadd.f32 %v601, %v617
        %v653 = vadd.f32 %v602, %v620
        %v654 = vadd.f32 %v603, %v645
        %v655 = vadd.f32 %v604, %v648
        %v656 = vmul.f32 %v650, 0.0078125
        %v657 = vmul.f32 %v651, 0.0078125
        %v658 = vmul.f32 %v652, 0.0078125
        %v659 = vmul.f32 %v653, 0.0078125
        %v660 = vmul.f32 %v656, %v656
        %v661 = vmul.f32 %v657, %v657
        %v662 = vsub.f32 %v658, %v660
        %v663 = vsub.f32 %v659, %v661
        %v664 = vadd.f32 %v662, 1e-05
        %v665 = vadd.f32 %v663, 1e-05
        %v666 = vrsqrt.pop %v664
        %v667 = vmul.f32 %v666, %v664
        %v668 = vmul.f32 %v667, %v666
        %v669 = vmul.f32 0.5, %v668
        %v670 = vsub.f32 1.5, %v669
        %v671 = vmul.f32 %v666, %v670
        %vm672 = vweird.f32 %v664
        %vm673 = vweird.f32 %v666
        %vm674 = vmor %vm672, %vm673
        %v675 = vsel %vm674, %v666, %v671
        %v676 = vrsqrt.pop %v665
        %v677 = vmul.f32 %v676, %v665
        %v678 = vmul.f32 %v677, %v676
        %v679 = vmul.f32 0.5, %v678
        %v680 = vsub.f32 1.5, %v679
        %v681 = vmul.f32 %v676, %v680
        %vm682 = vweird.f32 %v665
        %vm683 = vweird.f32 %v676
        %vm684 = vmor %vm682, %vm683
        %v685 = vsel %vm684, %v676, %v681
        %v686 = vmul.f32 %v654, %v675
        %v687 = vmul.f32 %v655, %v685
        %v688 = vmul.f32 %v656, %v675
        %v689 = vmul.f32 %v657, %v685
        %v690 = vld [vmem:[%s5] sm:$0x1]
        %v692 = vperm.slane %v690, 0
        %v694 = vmul.f32 %v688, %v692
        %v695 = vmul.f32 %v689, %v692
        %v696 = vsub.f32 %v686, %v694
        %v697 = vsub.f32 %v687, %v695
        %v698 = vld [vmem:[%s6] sm:$0x1]
        %v700 = vperm.slane %v698, 0
        %v702 = vadd.f32 %v696, %v700
        %v703 = vadd.f32 %v697, %v700
        %704 = vst [vmem:[%s437] sm:$0xff] %v702
        %705 = vst [vmem:[%s437 + $0x8] sm:$0xff] %v703
        %s706 = sand.u32 %s205, 1
        %s707 = scalar_lea.sflag [#allocation4], %s706
        %s708 = sand.u32 %s205, 1
        %s709 = smul.addr %s708, 16
        %s710 = scalar_lea.vmem [#allocation11], %s709
        // Predicated region
        $region69: #{tpu_custom_call.1} parent=47 // pred_check
          %p711 = pneg %p215
        $region70: #{tpu_custom_call.1} parent=47 // pred_check_branch
          %713 = sbr.rel (%p711) target = $region72
        $region71: #{tpu_custom_call.1} parent=47 // pred_region
          %s714 = smul.u32 2, %s30
          %716 = vsyncadd %s707, 0
          %s717 = smul.addr %s714, 8
          %s718 = scalar_lea.hbm %s7, %s717
          %s719 = sshll.u32 %s710, 4
          %s720 = int_to_ptr.vmem [resolvable:$true] %s719
          %s721 = sshll.u32 %s718, 4
          %s722 = int_to_ptr.hbm [resolvable:$true] %s721
          %727 = dma.vmem_to_hbm [thread:$0]  %s720, 256, %s722, %s707, 128, 128, 8
        $region72: #{tpu_custom_call.1} parent=47 // pred_fallthru
          _
      $region48: #{tpu_custom_call.1} parent=5 // pred_fallthru
        _
      %p728 = scmp.le.s32.totalorder 2, %s25
      // Predicated region
      $region73: #{tpu_custom_call.1} parent=5 // pred_check
        %p729 = pneg %p728
      $region74: #{tpu_custom_call.1} parent=5 // pred_check_branch
        %731 = sbr.rel (%p729) target = $region76
      $region75: #{tpu_custom_call.1} parent=5 // pred_region
        %s732 = ssub.s32 %s25, 2
        // Predicated region
        $region77: #{tpu_custom_call.1} parent=75 // pred_check
          %p733 = pneg %p221
        $region78: #{tpu_custom_call.1} parent=75 // pred_check_branch
          %735 = sbr.rel (%p733) target = $region80
        $region79: #{tpu_custom_call.1} parent=75 // pred_region
          %s736 = sand.u32 %s206, 1
          %s737 = scalar_lea.sflag [#allocation4], %s736
          %s738 = sand.u32 %s206, 1
          %s739 = smul.addr %s738, 16
          %s740 = scalar_lea.vmem [#allocation11], %s739
          %742 = dma.done %s737, 256
        $region80: #{tpu_custom_call.1} parent=75 // pred_fallthru
          _
      $region76: #{tpu_custom_call.1} parent=5 // pred_fallthru
        _
    $region6: #{tpu_custom_call.1} parent=1 // loop_footer
      %s29 = sadd.s32 1, %s25
    $region7: #{tpu_custom_call.1} parent=1 // loop_footer_branch
      %24 = sbr.rel target = $region3
    $region8: #{tpu_custom_call.1} parent=1 // loop_exit
      _
    %743 = vsyncpa [#allocation3], 1
    %s744 = scalar_lea.sflag [#allocation3], 1
    %745 = vsyncpa %s744, 1
    %746 = vsyncpa [#allocation6], 1
    %s747 = scalar_lea.sflag [#allocation6], 1
    %748 = vsyncpa %s747, 1
    %749 = vsyncpa [#allocation9], 1
    %s750 = scalar_lea.sflag [#allocation9], 1
    %751 = vsyncpa %s750, 1
    %752 = vsyncpa [#allocation4], 1
    %s753 = scalar_lea.sflag [#allocation4], 1
    %754 = vsyncpa %s753, 1

</llo_original>
